<compile_context>
chip_gen: v7x
topology: tpu7x:2x2x1
jax: 0.10.0
libtpu: 0.0.40
codegen_flags: <defaults>
</compile_context>

<pallas_src>
import functools

import jax
import jax.numpy as jnp
from jax import lax
from jax.experimental import pallas as pl
from jax.experimental.pallas import tpu as pltpu


# ---------------------------------------------------------------------------
# Kernel
# ---------------------------------------------------------------------------
def _ffn_fused_kernel(x_ref, w1_ref, b1_ref, w2_ref, b2_ref, g_ref, bt_ref, o_ref,
                      *, eps: float, activation: str, normalize_before: bool):
    # x: (tile_n, d_model); w1: (d_model, d_ff); w2: (d_ff, d_model)
    x = x_ref[...].astype(jnp.float32)          # residual / LN operand (f32)

    def layer_norm(t):
        mean = jnp.mean(t, axis=-1, keepdims=True)
        c = t - mean
        var = jnp.mean(c * c, axis=-1, keepdims=True)
        inv = lax.rsqrt(var + eps)
        return c * inv * g_ref[...].astype(jnp.float32) + bt_ref[...].astype(jnp.float32)

    if normalize_before:
        ffn_in = layer_norm(x).astype(w1_ref.dtype)
    else:
        # Post-norm: feed the MXU straight from the input (one cast, no f32 round trip).
        ffn_in = x_ref[...].astype(w1_ref.dtype)

    # linear1 + activation (hidden stays in VMEM/vregs, never written to HBM)
    h = jnp.dot(ffn_in, w1_ref[...], preferred_element_type=jnp.float32)
    h = h + b1_ref[...].astype(jnp.float32)
    if activation == "relu":
        h = jnp.maximum(h, 0.0)
    elif activation == "gelu":
        h = jax.nn.gelu(h, approximate=False)   # PyTorch F.gelu default = exact erf
    else:
        raise NotImplementedError(activation)

    # linear2
    y = jnp.dot(h.astype(w2_ref.dtype), w2_ref[...], preferred_element_type=jnp.float32)
    y = y + b2_ref[...].astype(jnp.float32)

    # residual (+ post-norm)
    r = x + y
    out = r if normalize_before else layer_norm(r)
    o_ref[...] = out.astype(o_ref.dtype)


# ---------------------------------------------------------------------------
# Tile / VMEM budgeting
# ---------------------------------------------------------------------------
def _round_up(n: int, m: int) -> int:
    return pl.cdiv(n, m) * m


def _vmem_need_bytes(tile, d_model, d_ff, x_isz, w_isz, out_isz, const_buffers=1):
    const = (2 * d_model * d_ff + d_ff + 3 * d_model) * w_isz * const_buffers
    io = 2 * tile * d_model * (x_isz + out_isz)         # double-buffered act tiles
    f32_tmp = tile * (d_ff + 3 * d_model) * 4           # f32 hidden + f32 temps
    return const + io + f32_tmp


def _select_tile(n, d_model, d_ff, x_isz, w_isz, out_isz, tile_n, vmem_budget):
    tile = max(8, min(_round_up(tile_n, 8), _round_up(n, 8)))
    while tile > 8 and _vmem_need_bytes(tile, d_model, d_ff, x_isz, w_isz,
                                        out_isz) > vmem_budget:
        tile = max(8, _round_up(tile // 2, 8))
    # Give both v7x TensorCores work: prefer >=2 row tiles over a grid of 1.
    if pl.cdiv(n, tile) < 2 and n > 8:
        tile = max(8, _round_up(pl.cdiv(n, 2), 8))
    return tile


# ---------------------------------------------------------------------------
# Wrapper
# ---------------------------------------------------------------------------
def ffn_layer_pallas(x, params, *, eps=1e-5, activation="relu",
                     normalize_before=False, tile_n=512,
                     vmem_budget_bytes=48 * 1024 * 1024, interpret=False):
    """Fused FFN block. x: (..., d_model)."""
    w1, b1, w2, b2, gamma, beta = params
    d_model = x.shape[-1]
    d_ff = w1.shape[1]
    lead = x.shape[:-1]

    xf = x.reshape(-1, d_model)
    n = xf.shape[0]

    x_isz = jnp.dtype(xf.dtype).itemsize
    w_isz = jnp.dtype(w1.dtype).itemsize
    out_isz = x_isz

    tile = _select_tile(n, d_model, d_ff, x_isz, w_isz, out_isz,
                        tile_n, vmem_budget_bytes)
    grid = (pl.cdiv(n, tile),)       # ragged last tile -> partial-block masking

    # Explicit scoped-VMEM budget (assume double-buffered consts in the fallback path).
    need = _vmem_need_bytes(tile, d_model, d_ff, x_isz, w_isz, out_isz, const_buffers=2)
    vmem_limit = int(min(56 * 1024 * 1024, max(int(1.3 * need), 16 * 1024 * 1024)))

    kernel = functools.partial(_ffn_fused_kernel, eps=eps, activation=activation,
                               normalize_before=normalize_before)

    flops = 4 * n * d_model * d_ff + 12 * n * d_model
    bytes_accessed = (2 * n * d_model) * x_isz + sum(
        int(p.size) * jnp.dtype(p.dtype).itemsize for p in params)

    def build(single_buffer_consts):
        ck = {"pipeline_mode": pl.Buffered(1)} if single_buffer_consts else {}
        in_specs = [
            pl.BlockSpec((tile, d_model), lambda i: (i, 0)),          # activations: tiled
            pl.BlockSpec((d_model, d_ff), lambda i: (0, 0), **ck),    # w1: VMEM-resident
            pl.BlockSpec((1, d_ff), lambda i: (0, 0), **ck),          # b1
            pl.BlockSpec((d_ff, d_model), lambda i: (0, 0), **ck),    # w2
            pl.BlockSpec((1, d_model), lambda i: (0, 0), **ck),       # b2
            pl.BlockSpec((1, d_model), lambda i: (0, 0), **ck),       # LN gamma
            pl.BlockSpec((1, d_model), lambda i: (0, 0), **ck),       # LN beta
        ]
        return pl.pallas_call(
            kernel,
            out_shape=jax.ShapeDtypeStruct((n, d_model), x.dtype),
            grid=grid,
            in_specs=in_specs,
            out_specs=pl.BlockSpec((tile, d_model), lambda i: (i, 0)),
            compiler_params=pltpu.CompilerParams(
                dimension_semantics=("parallel",),   # independent row tiles -> megacore
                vmem_limit_bytes=vmem_limit,
            ),
            cost_estimate=pl.CostEstimate(flops=int(flops),
                                          transcendentals=int(2 * n),
                                          bytes_accessed=int(bytes_accessed)),
            interpret=interpret,
        )

    try:
        out = build(True)(xf, w1, b1, w2, b2, gamma, beta)
    except Exception:
        # pl.Buffered(1) not accepted by this JAX build -> default double-buffering.
        out = build(False)(xf, w1, b1, w2, b2, gamma, beta)

    return out.reshape(*lead, d_model)


# ---------------------------------------------------------------------------
# Module port
# ---------------------------------------------------------------------------
class FFNLayer:
    """JAX/Pallas port of the PyTorch FFNLayer (dropout is identity at p=0 / eval)."""

    def __init__(self, d_model, dim_feedforward=2048, dropout=0.0,
                 activation="relu", normalize_before=False, *, key,
                 param_dtype=jnp.float32):
        if activation not in ("relu", "gelu"):
            # TODO(synk): 'glu' activation (halves the feature dim) not wired into the fused kernel.
            raise NotImplementedError(f"activation {activation!r} not supported")
        # TODO(synk): dropout > 0 (training-mode PRNG) not implemented; p=0.0 / eval is identity.
        self.d_model = d_model
        self.dim_feedforward = dim_feedforward
        self.activation = activation
        self.normalize_before = normalize_before
        self.eps = 1e-5

        k1, k2, k3, k4 = jax.random.split(key, 4)

        def xavier_uniform(k, fan_in, fan_out):
            bound = (6.0 / (fan_in + fan_out)) ** 0.5
            # stored (in, out): hot path is x @ W, no transpose needed
            return jax.random.uniform(k, (fan_in, fan_out), jnp.float32,
                                      -bound, bound).astype(param_dtype)

        def linear_bias(k, fan_in, fan_out):
            bound = 1.0 / (fan_in ** 0.5)
            return jax.random.uniform(k, (1, fan_out), jnp.float32,
                                      -bound, bound).astype(param_dtype)

        w1 = xavier_uniform(k1, d_model, dim_feedforward)
        b1 = linear_bias(k2, d_model, dim_feedforward)
        w2 = xavier_uniform(k3, dim_feedforward, d_model)
        b2 = linear_bias(k4, dim_feedforward, d_model)
        gamma = jnp.ones((1, d_model), param_dtype)
        beta = jnp.zeros((1, d_model), param_dtype)
        self.params = (w1, b1, w2, b2, gamma, beta)

    def __call__(self, tgt, *, tile_n=512, vmem_budget_bytes=48 * 1024 * 1024):
        return ffn_layer_pallas(tgt, self.params, eps=self.eps,
                                activation=self.activation,
                                normalize_before=self.normalize_before,
                                tile_n=tile_n,
                                vmem_budget_bytes=vmem_budget_bytes)


# ---------------------------------------------------------------------------
# Pure-JAX reference + demo
# ---------------------------------------------------------------------------
def _reference_ffn(params, x, *, eps=1e-5, activation="relu", normalize_before=False):
    w1, b1, w2, b2, gamma, beta = params

    def ln(t):
        m = jnp.mean(t, axis=-1, keepdims=True)
        v = jnp.mean((t - m) ** 2, axis=-1, keepdims=True)
        return (t - m) * lax.rsqrt(v + eps) * gamma[0] + beta[0]

    act = {"relu": lambda t: jnp.maximum(t, 0.0),
           "gelu": lambda t: jax.nn.gelu(t, approximate=False)}[activation]

    def ffn(t):
        return act(t @ w1 + b1[0]) @ w2 + b2[0]

    if normalize_before:
        return x + ffn(ln(x))
    return ln(x + ffn(x))


if __name__ == "__main__":
    key = jax.random.PRNGKey(0)
    k_in, k_p1, k_p2 = jax.random.split(key, 3)

    # Small, 128-aligned feature dims (lane-dense); (seq, batch, d_model) decoder tgt.
    seq, batch, d_model, d_ff = 64, 2, 128, 256
    tgt = jax.random.normal(k_in, (seq, batch, d_model), dtype=jnp.float32)

    # 1) Post-norm, f32 params: tight check against the pure-JAX reference.
    layer = FFNLayer(d_model, dim_feedforward=d_ff, dropout=0.0,
                     activation="relu", normalize_before=False, key=k_p1)
    out = jax.block_until_ready(layer(tgt))
    ref = _reference_ffn(layer.params, tgt, eps=layer.eps,
                         activation="relu", normalize_before=False)
    assert out.shape == (seq, batch, d_model)
    max_err = float(jnp.max(jnp.abs(out - ref)))
    assert jnp.allclose(out, ref, atol=1e-4, rtol=1e-4), f"max abs err {max_err}"

    # 2) Pre-norm, bf16 params, ragged token count (exercises partial-block masking
    #    and the bf16-MXU path); looser tolerance since weights are bf16.
    layer_bf16 = FFNLayer(d_model, dim_feedforward=d_ff, dropout=0.0,
                          activation="relu", normalize_before=True, key=k_p2,
                          param_dtype=jnp.bfloat16)
    tgt2 = tgt[:51]                                   # n = 102 rows
    out2 = jax.block_until_ready(layer_bf16(tgt2))
    params_f32 = jax.tree.map(lambda p: p.astype(jnp.float32), layer_bf16.params)
    ref2 = _reference_ffn(params_f32, tgt2, eps=layer_bf16.eps,
                          activation="relu", normalize_before=True)
    assert out2.shape == tgt2.shape
    max_err2 = float(jnp.max(jnp.abs(out2 - ref2)))
    assert jnp.allclose(out2, ref2, atol=5e-2, rtol=5e-2), f"bf16 max abs err {max_err2}"

    print("KERNEL_OK")
</pallas_src>

<mosaic_0001>
module attributes {stable_mosaic.version = 11 : i64} {
  func.func @_ffn_fused_kernel(%arg0: i32, %arg1: memref<64x128xf32, #tpu.memory_space<vmem>>, %arg2: memref<128x256xf32, #tpu.memory_space<vmem>>, %arg3: memref<1x256xf32, #tpu.memory_space<vmem>>, %arg4: memref<256x128xf32, #tpu.memory_space<vmem>>, %arg5: memref<1x128xf32, #tpu.memory_space<vmem>>, %arg6: memref<1x128xf32, #tpu.memory_space<vmem>>, %arg7: memref<1x128xf32, #tpu.memory_space<vmem>>, %arg8: memref<64x128xf32, #tpu.memory_space<vmem>>) attributes {dimension_semantics = [#tpu.dimension_semantics<parallel>], iteration_bounds = array<i64: 2>, scalar_prefetch = 0 : i64, scratch_operands = 0 : i64, tpu.core_type = #tpu.core_type<tc>, window_params = [{transform_indices = @transform_0, window_bounds = array<i64: 64, 128>}, {pipeline_mode = #tpu.pipeline_mode<synchronous>, transform_indices = @transform_1, window_bounds = array<i64: 128, 256>}, {pipeline_mode = #tpu.pipeline_mode<synchronous>, transform_indices = @transform_2, window_bounds = array<i64: 1, 256>}, {pipeline_mode = #tpu.pipeline_mode<synchronous>, transform_indices = @transform_3, window_bounds = array<i64: 256, 128>}, {pipeline_mode = #tpu.pipeline_mode<synchronous>, transform_indices = @transform_4, window_bounds = array<i64: 1, 128>}, {pipeline_mode = #tpu.pipeline_mode<synchronous>, transform_indices = @transform_5, window_bounds = array<i64: 1, 128>}, {pipeline_mode = #tpu.pipeline_mode<synchronous>, transform_indices = @transform_6, window_bounds = array<i64: 1, 128>}, {transform_indices = @transform_7, window_bounds = array<i64: 64, 128>}]} {
    %c0 = arith.constant 0 : index
    %c0_0 = arith.constant 0 : index
    %0 = vector.load %arg1[%c0, %c0_0] : memref<64x128xf32, #tpu.memory_space<vmem>>, vector<64x128xf32>
    %c0_1 = arith.constant 0 : index
    %c0_2 = arith.constant 0 : index
    %1 = vector.load %arg1[%c0_1, %c0_2] : memref<64x128xf32, #tpu.memory_space<vmem>>, vector<64x128xf32>
    %c0_3 = arith.constant 0 : index
    %c0_4 = arith.constant 0 : index
    %2 = vector.load %arg2[%c0_3, %c0_4] : memref<128x256xf32, #tpu.memory_space<vmem>>, vector<128x256xf32>
    %cst = arith.constant dense<0.000000e+00> : vector<64x256xf32>
    %3 = tpu.matmul %1, %2, %cst {dimension_numbers = #tpu.dot_dimension_numbers<[1], [0], [0], [1], [0, 0, 1, 1], [], []>} : vector<64x128xf32>, vector<128x256xf32>, vector<64x256xf32> -> vector<64x256xf32>
    %c0_5 = arith.constant 0 : index
    %c0_6 = arith.constant 0 : index
    %4 = vector.load %arg3[%c0_5, %c0_6] : memref<1x256xf32, #tpu.memory_space<vmem>>, vector<1x256xf32>
    %5 = vector.broadcast %4 : vector<1x256xf32> to vector<64x256xf32>
    %6 = arith.addf %3, %5 : vector<64x256xf32>
    %cst_7 = arith.constant 0.000000e+00 : f32
    %7 = vector.broadcast %cst_7 : f32 to vector<64x256xf32>
    %8 = arith.maximumf %6, %7 : vector<64x256xf32>
    %c0_8 = arith.constant 0 : index
    %c0_9 = arith.constant 0 : index
    %9 = vector.load %arg4[%c0_8, %c0_9] : memref<256x128xf32, #tpu.memory_space<vmem>>, vector<256x128xf32>
    %cst_10 = arith.constant dense<0.000000e+00> : vector<64x128xf32>
    %10 = tpu.matmul %8, %9, %cst_10 {dimension_numbers = #tpu.dot_dimension_numbers<[1], [0], [0], [1], [0, 0, 1, 1], [], []>} : vector<64x256xf32>, vector<256x128xf32>, vector<64x128xf32> -> vector<64x128xf32>
    %c0_11 = arith.constant 0 : index
    %c0_12 = arith.constant 0 : index
    %11 = vector.load %arg5[%c0_11, %c0_12] : memref<1x128xf32, #tpu.memory_space<vmem>>, vector<1x128xf32>
    %12 = vector.broadcast %11 : vector<1x128xf32> to vector<64x128xf32>
    %13 = arith.addf %10, %12 : vector<64x128xf32>
    %14 = arith.addf %0, %13 : vector<64x128xf32>
    %cst_13 = arith.constant dense<0.000000e+00> : vector<64xf32>
    %15 = vector.multi_reduction <add>, %14, %cst_13 [1] : vector<64x128xf32> to vector<64xf32>
    %16 = vector.shape_cast %15 : vector<64xf32> to vector<64x1xf32>
    %cst_14 = arith.constant 1.280000e+02 : f32
    %17 = vector.broadcast %cst_14 : f32 to vector<64x1xf32>
    %18 = arith.divf %16, %17 : vector<64x1xf32>
    %19 = vector.broadcast %18 : vector<64x1xf32> to vector<64x128xf32>
    %20 = arith.subf %14, %19 : vector<64x128xf32>
    %21 = arith.mulf %20, %20 : vector<64x128xf32>
    %cst_15 = arith.constant dense<0.000000e+00> : vector<64xf32>
    %22 = vector.multi_reduction <add>, %21, %cst_15 [1] : vector<64x128xf32> to vector<64xf32>
    %23 = vector.shape_cast %22 : vector<64xf32> to vector<64x1xf32>
    %cst_16 = arith.constant 1.280000e+02 : f32
    %24 = vector.broadcast %cst_16 : f32 to vector<64x1xf32>
    %25 = arith.divf %23, %24 : vector<64x1xf32>
    %cst_17 = arith.constant 9.99999974E-6 : f32
    %26 = vector.broadcast %cst_17 : f32 to vector<64x1xf32>
    %27 = arith.addf %25, %26 : vector<64x1xf32>
    %28 = math.rsqrt %27 : vector<64x1xf32>
    %29 = vector.broadcast %28 : vector<64x1xf32> to vector<64x128xf32>
    %30 = arith.mulf %20, %29 : vector<64x128xf32>
    %c0_18 = arith.constant 0 : index
    %c0_19 = arith.constant 0 : index
    %31 = vector.load %arg6[%c0_18, %c0_19] : memref<1x128xf32, #tpu.memory_space<vmem>>, vector<1x128xf32>
    %32 = vector.broadcast %31 : vector<1x128xf32> to vector<64x128xf32>
    %33 = arith.mulf %30, %32 : vector<64x128xf32>
    %c0_20 = arith.constant 0 : index
    %c0_21 = arith.constant 0 : index
    %34 = vector.load %arg7[%c0_20, %c0_21] : memref<1x128xf32, #tpu.memory_space<vmem>>, vector<1x128xf32>
    %35 = vector.broadcast %34 : vector<1x128xf32> to vector<64x128xf32>
    %36 = arith.addf %33, %35 : vector<64x128xf32>
    %c0_22 = arith.constant 0 : index
    %c0_23 = arith.constant 0 : index
    %37 = vector.load %arg8[%c0_22, %c0_23] : memref<64x128xf32, #tpu.memory_space<vmem>>, vector<64x128xf32>
    tpu.vector_store %arg8[%c0_22, %c0_23], %36 {strides = array<i32>} : memref<64x128xf32, #tpu.memory_space<vmem>>, vector<64x128xf32>,
    return
  }
  func.func @transform_0(%arg0: i32) -> (i32, i32) {
    %c0_i32 = arith.constant 0 : i32
    %c0_i32_0 = arith.constant 0 : i32
    return %arg0, %c0_i32 : i32, i32
  }
  func.func @transform_1(%arg0: i32) -> (i32, i32) {
    %c0_i32 = arith.constant 0 : i32
    %c0_i32_0 = arith.constant 0 : i32
    %c0_i32_1 = arith.constant 0 : i32
    return %c0_i32, %c0_i32_0 : i32, i32
  }
  func.func @transform_2(%arg0: i32) -> (i32, i32) {
    %c0_i32 = arith.constant 0 : i32
    %c0_i32_0 = arith.constant 0 : i32
    %c0_i32_1 = arith.constant 0 : i32
    return %c0_i32, %c0_i32_0 : i32, i32
  }
  func.func @transform_3(%arg0: i32) -> (i32, i32) {
    %c0_i32 = arith.constant 0 : i32
    %c0_i32_0 = arith.constant 0 : i32
    %c0_i32_1 = arith.constant 0 : i32
    return %c0_i32, %c0_i32_0 : i32, i32
  }
  func.func @transform_4(%arg0: i32) -> (i32, i32) {
    %c0_i32 = arith.constant 0 : i32
    %c0_i32_0 = arith.constant 0 : i32
    %c0_i32_1 = arith.constant 0 : i32
    return %c0_i32, %c0_i32_0 : i32, i32
  }
  func.func @transform_5(%arg0: i32) -> (i32, i32) {
    %c0_i32 = arith.constant 0 : i32
    %c0_i32_0 = arith.constant 0 : i32
    %c0_i32_1 = arith.constant 0 : i32
    return %c0_i32, %c0_i32_0 : i32, i32
  }
  func.func @transform_6(%arg0: i32) -> (i32, i32) {
    %c0_i32 = arith.constant 0 : i32
    %c0_i32_0 = arith.constant 0 : i32
    %c0_i32_1 = arith.constant 0 : i32
    return %c0_i32, %c0_i32_0 : i32, i32
  }
  func.func @transform_7(%arg0: i32) -> (i32, i32) {
    %c0_i32 = arith.constant 0 : i32
    %c0_i32_0 = arith.constant 0 : i32
    return %arg0, %c0_i32 : i32, i32
  }
}

module attributes {stable_mosaic.version = 11 : i64} {
  func.func @_ffn_fused_kernel(%arg0: i32, %arg1: memref<64x128xf32, #tpu.memory_space<vmem>>, %arg2: memref<128x256xf32, #tpu.memory_space<vmem>>, %arg3: memref<1x256xf32, #tpu.memory_space<vmem>>, %arg4: memref<256x128xf32, #tpu.memory_space<vmem>>, %arg5: memref<1x128xf32, #tpu.memory_space<vmem>>, %arg6: memref<1x128xf32, #tpu.memory_space<vmem>>, %arg7: memref<1x128xf32, #tpu.memory_space<vmem>>, %arg8: memref<64x128xf32, #tpu.memory_space<vmem>>) attributes {dimension_semantics = [#tpu.dimension_semantics<parallel>], iteration_bounds = array<i64: 2>, scalar_prefetch = 0 : i64, scratch_operands = 0 : i64, tpu.core_type = #tpu.core_type<tc>, window_params = [{transform_indices = @transform_0, window_bounds = array<i64: 64, 128>}, {pipeline_mode = #tpu.pipeline_mode<synchronous>, transform_indices = @transform_1, window_bounds = array<i64: 128, 256>}, {pipeline_mode = #tpu.pipeline_mode<synchronous>, transform_indices = @transform_2, window_bounds = array<i64: 1, 256>}, {pipeline_mode = #tpu.pipeline_mode<synchronous>, transform_indices = @transform_3, window_bounds = array<i64: 256, 128>}, {pipeline_mode = #tpu.pipeline_mode<synchronous>, transform_indices = @transform_4, window_bounds = array<i64: 1, 128>}, {pipeline_mode = #tpu.pipeline_mode<synchronous>, transform_indices = @transform_5, window_bounds = array<i64: 1, 128>}, {pipeline_mode = #tpu.pipeline_mode<synchronous>, transform_indices = @transform_6, window_bounds = array<i64: 1, 128>}, {transform_indices = @transform_7, window_bounds = array<i64: 64, 128>}]} {
    %c0 = arith.constant 0 : index
    %c0_0 = arith.constant 0 : index
    %0 = vector.load %arg1[%c0, %c0_0] : memref<64x128xf32, #tpu.memory_space<vmem>>, vector<64x128xf32>
    %c0_1 = arith.constant 0 : index
    %c0_2 = arith.constant 0 : index
    %1 = vector.load %arg1[%c0_1, %c0_2] : memref<64x128xf32, #tpu.memory_space<vmem>>, vector<64x128xf32>
    %c0_3 = arith.constant 0 : index
    %c0_4 = arith.constant 0 : index
    %2 = vector.load %arg2[%c0_3, %c0_4] : memref<128x256xf32, #tpu.memory_space<vmem>>, vector<128x256xf32>
    %cst = arith.constant dense<0.000000e+00> : vector<64x256xf32>
    %3 = tpu.matmul %1, %2, %cst {dimension_numbers = #tpu.dot_dimension_numbers<[1], [0], [0], [1], [0, 0, 1, 1], [], []>} : vector<64x128xf32>, vector<128x256xf32>, vector<64x256xf32> -> vector<64x256xf32>
    %c0_5 = arith.constant 0 : index
    %c0_6 = arith.constant 0 : index
    %4 = vector.load %arg3[%c0_5, %c0_6] : memref<1x256xf32, #tpu.memory_space<vmem>>, vector<1x256xf32>
    %5 = vector.broadcast %4 : vector<1x256xf32> to vector<64x256xf32>
    %6 = arith.addf %3, %5 : vector<64x256xf32>
    %cst_7 = arith.constant 0.000000e+00 : f32
    %7 = vector.broadcast %cst_7 : f32 to vector<64x256xf32>
    %8 = arith.maximumf %6, %7 : vector<64x256xf32>
    %c0_8 = arith.constant 0 : index
    %c0_9 = arith.constant 0 : index
    %9 = vector.load %arg4[%c0_8, %c0_9] : memref<256x128xf32, #tpu.memory_space<vmem>>, vector<256x128xf32>
    %cst_10 = arith.constant dense<0.000000e+00> : vector<64x128xf32>
    %10 = tpu.matmul %8, %9, %cst_10 {dimension_numbers = #tpu.dot_dimension_numbers<[1], [0], [0], [1], [0, 0, 1, 1], [], []>} : vector<64x256xf32>, vector<256x128xf32>, vector<64x128xf32> -> vector<64x128xf32>
    %c0_11 = arith.constant 0 : index
    %c0_12 = arith.constant 0 : index
    %11 = vector.load %arg5[%c0_11, %c0_12] : memref<1x128xf32, #tpu.memory_space<vmem>>, vector<1x128xf32>
    %12 = vector.broadcast %11 : vector<1x128xf32> to vector<64x128xf32>
    %13 = arith.addf %10, %12 : vector<64x128xf32>
    %14 = arith.addf %0, %13 : vector<64x128xf32>
    %cst_13 = arith.constant dense<0.000000e+00> : vector<64xf32>
    %15 = vector.multi_reduction <add>, %14, %cst_13 [1] : vector<64x128xf32> to vector<64xf32>
    %16 = vector.shape_cast %15 : vector<64xf32> to vector<64x1xf32>
    %cst_14 = arith.constant 1.280000e+02 : f32
    %17 = vector.broadcast %cst_14 : f32 to vector<64x1xf32>
    %18 = arith.divf %16, %17 : vector<64x1xf32>
    %19 = vector.broadcast %18 : vector<64x1xf32> to vector<64x128xf32>
    %20 = arith.subf %14, %19 : vector<64x128xf32>
    %21 = arith.mulf %20, %20 : vector<64x128xf32>
    %cst_15 = arith.constant dense<0.000000e+00> : vector<64xf32>
    %22 = vector.multi_reduction <add>, %21, %cst_15 [1] : vector<64x128xf32> to vector<64xf32>
    %23 = vector.shape_cast %22 : vector<64xf32> to vector<64x1xf32>
    %cst_16 = arith.constant 1.280000e+02 : f32
    %24 = vector.broadcast %cst_16 : f32 to vector<64x1xf32>
    %25 = arith.divf %23, %24 : vector<64x1xf32>
    %cst_17 = arith.constant 9.99999974E-6 : f32
    %26 = vector.broadcast %cst_17 : f32 to vector<64x1xf32>
    %27 = arith.addf %25, %26 : vector<64x1xf32>
    %28 = math.rsqrt %27 : vector<64x1xf32>
    %29 = vector.broadcast %28 : vector<64x1xf32> to vector<64x128xf32>
    %30 = arith.mulf %20, %29 : vector<64x128xf32>
    %c0_18 = arith.constant 0 : index
    %c0_19 = arith.constant 0 : index
    %31 = vector.load %arg6[%c0_18, %c0_19] : memref<1x128xf32, #tpu.memory_space<vmem>>, vector<1x128xf32>
    %32 = vector.broadcast %31 : vector<1x128xf32> to vector<64x128xf32>
    %33 = arith.mulf %30, %32 : vector<64x128xf32>
    %c0_20 = arith.constant 0 : index
    %c0_21 = arith.constant 0 : index
    %34 = vector.load %arg7[%c0_20, %c0_21] : memref<1x128xf32, #tpu.memory_space<vmem>>, vector<1x128xf32>
    %35 = vector.broadcast %34 : vector<1x128xf32> to vector<64x128xf32>
    %36 = arith.addf %33, %35 : vector<64x128xf32>
    %c0_22 = arith.constant 0 : index
    %c0_23 = arith.constant 0 : index
    %37 = vector.load %arg8[%c0_22, %c0_23] : memref<64x128xf32, #tpu.memory_space<vmem>>, vector<64x128xf32>
    tpu.vector_store %arg8[%c0_22, %c0_23], %36 {strides = array<i32>} : memref<64x128xf32, #tpu.memory_space<vmem>>, vector<64x128xf32>,
    return
  }
  func.func @transform_0(%arg0: i32) -> (i32, i32) {
    %c0_i32 = arith.constant 0 : i32
    %c0_i32_0 = arith.constant 0 : i32
    return %arg0, %c0_i32 : i32, i32
  }
  func.func @transform_1(%arg0: i32) -> (i32, i32) {
    %c0_i32 = arith.constant 0 : i32
    %c0_i32_0 = arith.constant 0 : i32
    %c0_i32_1 = arith.constant 0 : i32
    return %c0_i32, %c0_i32_0 : i32, i32
  }
  func.func @transform_2(%arg0: i32) -> (i32, i32) {
    %c0_i32 = arith.constant 0 : i32
    %c0_i32_0 = arith.constant 0 : i32
    %c0_i32_1 = arith.constant 0 : i32
    return %c0_i32, %c0_i32_0 : i32, i32
  }
  func.func @transform_3(%arg0: i32) -> (i32, i32) {
    %c0_i32 = arith.constant 0 : i32
    %c0_i32_0 = arith.constant 0 : i32
    %c0_i32_1 = arith.constant 0 : i32
    return %c0_i32, %c0_i32_0 : i32, i32
  }
  func.func @transform_4(%arg0: i32) -> (i32, i32) {
    %c0_i32 = arith.constant 0 : i32
    %c0_i32_0 = arith.constant 0 : i32
    %c0_i32_1 = arith.constant 0 : i32
    return %c0_i32, %c0_i32_0 : i32, i32
  }
  func.func @transform_5(%arg0: i32) -> (i32, i32) {
    %c0_i32 = arith.constant 0 : i32
    %c0_i32_0 = arith.constant 0 : i32
    %c0_i32_1 = arith.constant 0 : i32
    return %c0_i32, %c0_i32_0 : i32, i32
  }
  func.func @transform_6(%arg0: i32) -> (i32, i32) {
    %c0_i32 = arith.constant 0 : i32
    %c0_i32_0 = arith.constant 0 : i32
    %c0_i32_1 = arith.constant 0 : i32
    return %c0_i32, %c0_i32_0 : i32, i32
  }
  func.func @transform_7(%arg0: i32) -> (i32, i32) {
    %c0_i32 = arith.constant 0 : i32
    %c0_i32_0 = arith.constant 0 : i32
    return %arg0, %c0_i32 : i32, i32
  }
}

</mosaic_0001>

<llo_original>
// kernel: tpu_custom_call.1
$region0: #{tpu_custom_call.1}
  #allocation0 [shape = 'u32[]', space=smem, size = 0x4, offset = 0x4, fixed_abs, tag = 'smem constant byte address 0x4 - core index']
  #allocation1 [shape = 'u32[144,128]{1,0:T(1,128)}', space=vmem, size = 0x12000, scoped, tag = 'internal scratch']
  %s0 = inlined_call_operand.hbm [shape: f32[128,128], index: 0, kind: input, shape index: {}]
  %s1 = inlined_call_operand.hbm [shape: f32[128,256], index: 1, kind: input, shape index: {}]
  %s2 = inlined_call_operand.vmem [shape: f32[1,256], index: 2, kind: input, shape index: {}]
  %s3 = inlined_call_operand.hbm [shape: f32[256,128], index: 3, kind: input, shape index: {}]
  %s4 = inlined_call_operand.vmem [shape: f32[1,128], index: 4, kind: input, shape index: {}]
  %s5 = inlined_call_operand.vmem [shape: f32[1,128], index: 5, kind: input, shape index: {}]
  %s6 = inlined_call_operand.vmem [shape: f32[1,128], index: 6, kind: input, shape index: {}]
  %s7 = inlined_call_operand.hbm [shape: f32[128,128], index: 7, kind: output, shape index: {}]
  %s8 = sld [smem:[#allocation0]]
  $region73: #{tpu_custom_call.1} parent=0
    _
  %s10 = ssub.s32 1, %s8
  %s11 = scalar_select 0, %s10, %s8
  $region1: #{tpu_custom_call.1} parent=0
    #allocation2 [shape = 'u8[65536]{0}', space=vmem, size = 0x10000, scoped, tag = 'input window, operand 0']
    #allocation3 [shape = 's32[2]{0}', space=sflag, size = 0x8, scoped, tag = 'scoped memory for tpu_custom_call.1']
    #allocation4 [shape = 's32[2]{0}', space=sflag, size = 0x8, scoped, tag = 'scoped memory for tpu_custom_call.1']
    #allocation5 [shape = 'u8[131072]{0}', space=vmem, size = 0x20000, scoped, tag = 'input window, operand 1, single buffered']
    #allocation6 [shape = 's32[1]{0}', space=sflag, size = 0x4, scoped, tag = 'scoped memory for tpu_custom_call.1']
    #allocation7 [shape = 'u8[131072]{0}', space=vmem, size = 0x20000, scoped, tag = 'input window, operand 3, single buffered']
    #allocation8 [shape = 'u8[65536]{0}', space=vmem, size = 0x10000, scoped, tag = 'output window, operand 0']
    %12 = vsyncpa [#allocation3], 0
    %s13 = scalar_lea.sflag [#allocation3], 1
    %14 = vsyncpa %s13, 0
    %15 = vsyncpa [#allocation6], 0
    %16 = vsyncpa [#allocation4], 0
    %s17 = scalar_lea.sflag [#allocation4], 1
    %18 = vsyncpa %s17, 0
    loop: start=0, step=1, limit=4
    $region2: #{tpu_custom_call.1} parent=1 // loop_pre_header
      _
    $region3: #{tpu_custom_call.1} parent=1 // loop_header
      %s20 = sphi 0, %s24
      %p21 = scmp.ge.s32.totalorder %s20, 4
      %s30 = sphi 0, %s32
      %s33 = sphi 0, %s30
      %s34 = sphi 0, %s33
      %s50 = sphi 0, %s34
      %s54 = sphi 0, %s54
      %s56 = sphi 0, %s54
      %s57 = sphi 0, %s56
      %s71 = sphi 0, %s57
      %s75 = sphi 0, %s75
      %s77 = sphi 0, %s75
      %s78 = sphi 0, %s77
      %s92 = sphi 0, %s78
      %s96 = sphi 0, %s96
      %s98 = sphi 0, %s96
      %s99 = sphi 0, %s98
      %s113 = sphi 0, %s99
      %s117 = sphi 0, %s117
      %s119 = sphi 0, %s117
      %s120 = sphi 0, %s119
      %s134 = sphi 0, %s120
      %s138 = sphi 0, %s138
      %s140 = sphi 0, %s138
      %s141 = sphi 0, %s140
      %s155 = sphi 0, %s141
      %s159 = sphi 0, %s159
      %s161 = sphi 0, %s159
      %s162 = sphi 0, %s161
      %s176 = sphi 0, %s162
      %s182 = sphi 0, %s184
      %s185 = sphi 0, %s182
      %s186 = sphi 0, %s185
      %s202 = sphi 0, %s186
    $region4: #{tpu_custom_call.1} parent=1 // loop_header_branch
      %23 = sbr.rel (%p21) target = $region8
    $region5: #{tpu_custom_call.1} parent=1 // loop_body
      %s25 = ssub.s32 %s20, 1
      %s26 = ssub.s32 %s20, 2
      %s27 = sadd.s32 %s20, 1
      %s28 = ssub.s32 %s20, %s27
      %p29 = scmp.eq.s32.totalorder %s28, 0
      %s31 = sadd.s32 %s30, 1
      %s32 = scalar_select %p29, %s30, %s31
      %p35 = pneg %p29
      %p36 = scmp.eq.s32.totalorder %s20, 1
      %p37 = por %p35, %p36
      %p38 = scmp.ne.s32.totalorder %s30, %s33
      %p39 = scmp.eq.s32.totalorder %s20, 0
      %p40 = por %p38, %p39
      %p41 = scmp.ne.s32.totalorder %s30, %s33
      %p42 = scmp.eq.s32.totalorder %s25, 1
      %p43 = por %p41, %p42
      %p44 = scmp.ne.s32.totalorder %s33, %s34
      %p45 = scmp.eq.s32.totalorder %s25, 0
      %p46 = por %p44, %p45
      %p47 = scmp.ne.s32.totalorder %s33, %s34
      %p48 = scmp.eq.s32.totalorder %s26, 1
      %p49 = por %p47, %p48
      %p51 = scmp.ne.s32.totalorder %s34, %s50
      %p52 = scmp.eq.s32.totalorder %s26, 0
      %p53 = por %p51, %p52
      %s55 = sadd.s32 %s54, 1
      %p58 = scmp.eq.s32.totalorder %s20, 1
      %p59 = scmp.ne.s32.totalorder %s54, %s56
      %p60 = scmp.eq.s32.totalorder %s20, 0
      %p61 = por %p59, %p60
      %p62 = scmp.ne.s32.totalorder %s54, %s56
      %p63 = scmp.eq.s32.totalorder %s25, 1
      %p64 = por %p62, %p63
      %p65 = scmp.ne.s32.totalorder %s56, %s57
      %p66 = scmp.eq.s32.totalorder %s25, 0
      %p67 = por %p65, %p66
      %p68 = scmp.ne.s32.totalorder %s56, %s57
      %p69 = scmp.eq.s32.totalorder %s26, 1
      %p70 = por %p68, %p69
      %p72 = scmp.ne.s32.totalorder %s57, %s71
      %p73 = scmp.eq.s32.totalorder %s26, 0
      %p74 = por %p72, %p73
      %s76 = sadd.s32 %s75, 1
      %p79 = scmp.eq.s32.totalorder %s20, 1
      %p80 = scmp.ne.s32.totalorder %s75, %s77
      %p81 = scmp.eq.s32.totalorder %s20, 0
      %p82 = por %p80, %p81
      %p83 = scmp.ne.s32.totalorder %s75, %s77
      %p84 = scmp.eq.s32.totalorder %s25, 1
      %p85 = por %p83, %p84
      %p86 = scmp.ne.s32.totalorder %s77, %s78
      %p87 = scmp.eq.s32.totalorder %s25, 0
      %p88 = por %p86, %p87
      %p89 = scmp.ne.s32.totalorder %s77, %s78
      %p90 = scmp.eq.s32.totalorder %s26, 1
      %p91 = por %p89, %p90
      %p93 = scmp.ne.s32.totalorder %s78, %s92
      %p94 = scmp.eq.s32.totalorder %s26, 0
      %p95 = por %p93, %p94
      %s97 = sadd.s32 %s96, 1
      %p100 = scmp.eq.s32.totalorder %s20, 1
      %p101 = scmp.ne.s32.totalorder %s96, %s98
      %p102 = scmp.eq.s32.totalorder %s20, 0
      %p103 = por %p101, %p102
      %p104 = scmp.ne.s32.totalorder %s96, %s98
      %p105 = scmp.eq.s32.totalorder %s25, 1
      %p106 = por %p104, %p105
      %p107 = scmp.ne.s32.totalorder %s98, %s99
      %p108 = scmp.eq.s32.totalorder %s25, 0
      %p109 = por %p107, %p108
      %p110 = scmp.ne.s32.totalorder %s98, %s99
      %p111 = scmp.eq.s32.totalorder %s26, 1
      %p112 = por %p110, %p111
      %p114 = scmp.ne.s32.totalorder %s99, %s113
      %p115 = scmp.eq.s32.totalorder %s26, 0
      %p116 = por %p114, %p115
      %s118 = sadd.s32 %s117, 1
      %p121 = scmp.eq.s32.totalorder %s20, 1
      %p122 = scmp.ne.s32.totalorder %s117, %s119
      %p123 = scmp.eq.s32.totalorder %s20, 0
      %p124 = por %p122, %p123
      %p125 = scmp.ne.s32.totalorder %s117, %s119
      %p126 = scmp.eq.s32.totalorder %s25, 1
      %p127 = por %p125, %p126
      %p128 = scmp.ne.s32.totalorder %s119, %s120
      %p129 = scmp.eq.s32.totalorder %s25, 0
      %p130 = por %p128, %p129
      %p131 = scmp.ne.s32.totalorder %s119, %s120
      %p132 = scmp.eq.s32.totalorder %s26, 1
      %p133 = por %p131, %p132
      %p135 = scmp.ne.s32.totalorder %s120, %s134
      %p136 = scmp.eq.s32.totalorder %s26, 0
      %p137 = por %p135, %p136
      %s139 = sadd.s32 %s138, 1
      %p142 = scmp.eq.s32.totalorder %s20, 1
      %p143 = scmp.ne.s32.totalorder %s138, %s140
      %p144 = scmp.eq.s32.totalorder %s20, 0
      %p145 = por %p143, %p144
      %p146 = scmp.ne.s32.totalorder %s138, %s140
      %p147 = scmp.eq.s32.totalorder %s25, 1
      %p148 = por %p146, %p147
      %p149 = scmp.ne.s32.totalorder %s140, %s141
      %p150 = scmp.eq.s32.totalorder %s25, 0
      %p151 = por %p149, %p150
      %p152 = scmp.ne.s32.totalorder %s140, %s141
      %p153 = scmp.eq.s32.totalorder %s26, 1
      %p154 = por %p152, %p153
      %p156 = scmp.ne.s32.totalorder %s141, %s155
      %p157 = scmp.eq.s32.totalorder %s26, 0
      %p158 = por %p156, %p157
      %s160 = sadd.s32 %s159, 1
      %p163 = scmp.eq.s32.totalorder %s20, 1
      %p164 = scmp.ne.s32.totalorder %s159, %s161
      %p165 = scmp.eq.s32.totalorder %s20, 0
      %p166 = por %p164, %p165
      %p167 = scmp.ne.s32.totalorder %s159, %s161
      %p168 = scmp.eq.s32.totalorder %s25, 1
      %p169 = por %p167, %p168
      %p170 = scmp.ne.s32.totalorder %s161, %s162
      %p171 = scmp.eq.s32.totalorder %s25, 0
      %p172 = por %p170, %p171
      %p173 = scmp.ne.s32.totalorder %s161, %s162
      %p174 = scmp.eq.s32.totalorder %s26, 1
      %p175 = por %p173, %p174
      %p177 = scmp.ne.s32.totalorder %s162, %s176
      %p178 = scmp.eq.s32.totalorder %s26, 0
      %p179 = por %p177, %p178
      %s180 = ssub.s32 %s20, %s27
      %p181 = scmp.eq.s32.totalorder %s180, 0
      %s183 = sadd.s32 %s182, 1
      %s184 = scalar_select %p181, %s182, %s183
      %p187 = pneg %p181
      %p188 = scmp.eq.s32.totalorder %s20, 1
      %p189 = por %p187, %p188
      %p190 = scmp.ne.s32.totalorder %s182, %s185
      %p191 = scmp.eq.s32.totalorder %s20, 0
      %p192 = por %p190, %p191
      %p193 = scmp.ne.s32.totalorder %s182, %s185
      %p194 = scmp.eq.s32.totalorder %s25, 1
      %p195 = por %p193, %p194
      %p196 = scmp.ne.s32.totalorder %s185, %s186
      %p197 = scmp.eq.s32.totalorder %s25, 0
      %p198 = por %p196, %p197
      %p199 = scmp.ne.s32.totalorder %s185, %s186
      %p200 = scmp.eq.s32.totalorder %s26, 1
      %p201 = por %p199, %p200
      %p203 = scmp.ne.s32.totalorder %s186, %s202
      %p204 = scmp.eq.s32.totalorder %s26, 0
      %p205 = por %p203, %p204
      %p206 = scmp.le.s32.totalorder 1, %s20
      %p207 = scmp.lt.s32.totalorder %s20, 3
      %p208 = pnand %p206, %p207
      %p209 = pneg %p208
      // Predicated region
      $region9: #{tpu_custom_call.1} parent=5 // pred_check
        _
      $region10: #{tpu_custom_call.1} parent=5 // pred_check_branch
        %211 = sbr.rel (%p208) target = $region12
      $region11: #{tpu_custom_call.1} parent=5 // pred_region
        %s212 = ssub.s32 %s20, 1
        // Predicated region
        $region13: #{tpu_custom_call.1} parent=11 // pred_check
          %p213 = pneg %p67
        $region14: #{tpu_custom_call.1} parent=11 // pred_check_branch
          %215 = sbr.rel (%p213) target = $region16
        $region15: #{tpu_custom_call.1} parent=11 // pred_region
          %s217 = ssub.s32 4096, 4096
          %218 = vsyncadd [#allocation6], %s217
          %s219 = sshll.u32 [#allocation5], 4
          %s220 = int_to_ptr.vmem [resolvable:$true] %s219
          %225 = dma.hbm_to_vmem [thread:$0]  %s1, 4096, %s220, [#allocation6], 256, 256, 16
        $region16: #{tpu_custom_call.1} parent=11 // pred_fallthru
          _
        // Predicated region
        $region17: #{tpu_custom_call.1} parent=11 // pred_check
          %p226 = pneg %p88
        $region18: #{tpu_custom_call.1} parent=11 // pred_check_branch
          %228 = sbr.rel (%p226) target = $region20
        $region19: #{tpu_custom_call.1} parent=11 // pred_region
          _
        $region20: #{tpu_custom_call.1} parent=11 // pred_fallthru
          _
        // Predicated region
        $region21: #{tpu_custom_call.1} parent=11 // pred_check
          %p229 = pneg %p109
        $region22: #{tpu_custom_call.1} parent=11 // pred_check_branch
          %231 = sbr.rel (%p229) target = $region24
        $region23: #{tpu_custom_call.1} parent=11 // pred_region
          %s233 = ssub.s32 4096, 4096
          %234 = vsyncadd [#allocation6], %s233
          %s235 = sshll.u32 [#allocation7], 4
          %s236 = int_to_ptr.vmem [resolvable:$true] %s235
          %241 = dma.hbm_to_vmem [thread:$0]  %s3, 4096, %s236, [#allocation6], 128, 128, 8
        $region24: #{tpu_custom_call.1} parent=11 // pred_fallthru
          _
        // Predicated region
        $region25: #{tpu_custom_call.1} parent=11 // pred_check
          %p242 = pneg %p130
        $region26: #{tpu_custom_call.1} parent=11 // pred_check_branch
          %244 = sbr.rel (%p242) target = $region28
        $region27: #{tpu_custom_call.1} parent=11 // pred_region
          _
        $region28: #{tpu_custom_call.1} parent=11 // pred_fallthru
          _
        // Predicated region
        $region29: #{tpu_custom_call.1} parent=11 // pred_check
          %p245 = pneg %p151
        $region30: #{tpu_custom_call.1} parent=11 // pred_check_branch
          %247 = sbr.rel (%p245) target = $region32
        $region31: #{tpu_custom_call.1} parent=11 // pred_region
          _
        $region32: #{tpu_custom_call.1} parent=11 // pred_fallthru
          _
        // Predicated region
        $region33: #{tpu_custom_call.1} parent=11 // pred_check
          %p248 = pneg %p172
        $region34: #{tpu_custom_call.1} parent=11 // pred_check_branch
          %250 = sbr.rel (%p248) target = $region36
        $region35: #{tpu_custom_call.1} parent=11 // pred_region
          _
        $region36: #{tpu_custom_call.1} parent=11 // pred_fallthru
          _
      $region12: #{tpu_custom_call.1} parent=5 // pred_fallthru
        _
      %p251 = scmp.lt.s32.totalorder %s20, 2
      // Predicated region
      $region37: #{tpu_custom_call.1} parent=5 // pred_check
        %p252 = pneg %p251
      $region38: #{tpu_custom_call.1} parent=5 // pred_check_branch
        %254 = sbr.rel (%p252) target = $region40
      $region39: #{tpu_custom_call.1} parent=5 // pred_region
        // Predicated region
        $region41: #{tpu_custom_call.1} parent=39 // pred_check
          %p255 = pneg %p40
        $region42: #{tpu_custom_call.1} parent=39 // pred_check_branch
          %257 = sbr.rel (%p255) target = $region44
        $region43: #{tpu_custom_call.1} parent=39 // pred_region
          %s258 = sand.u32 %s30, 1
          %s259 = scalar_lea.sflag [#allocation3], %s258
          %s260 = sand.u32 %s30, 1
          %s261 = smul.addr %s260, 64
          %s262 = scalar_lea.vmem [#allocation2], %s261
          %s263 = smul.u32 8, %s20
          %s265 = ssub.s32 1024, 1024
          %266 = vsyncadd %s259, %s265
          %s267 = smul.addr %s263, 128
          %s268 = scalar_lea.hbm %s0, %s267
          %s269 = sshll.u32 %s262, 4
          %s270 = int_to_ptr.vmem [resolvable:$true] %s269
          %275 = dma.hbm_to_vmem [thread:$0]  %s268, 1024, %s270, %s259, 128, 128, 8
        $region44: #{tpu_custom_call.1} parent=39 // pred_fallthru
          _
      $region40: #{tpu_custom_call.1} parent=5 // pred_fallthru
        _
      %p276 = scmp.le.s32.totalorder 1, %s20
      %p277 = scmp.lt.s32.totalorder %s20, 3
      %p278 = pnand %p276, %p277
      %p279 = pneg %p278
      // Predicated region
      $region45: #{tpu_custom_call.1} parent=5 // pred_check
        _
      $region46: #{tpu_custom_call.1} parent=5 // pred_check_branch
        %281 = sbr.rel (%p278) target = $region48
      $region47: #{tpu_custom_call.1} parent=5 // pred_region
        %s282 = ssub.s32 %s20, 1
        %s283 = sand.u32 %s33, 1
        %s284 = scalar_lea.sflag [#allocation3], %s283
        %s285 = sand.u32 %s33, 1
        %s286 = smul.addr %s285, 64
        %s287 = scalar_lea.vmem [#allocation2], %s286
        // Predicated region
        $region49: #{tpu_custom_call.1} parent=47 // pred_check
          %p288 = pneg %p46
        $region50: #{tpu_custom_call.1} parent=47 // pred_check_branch
          %290 = sbr.rel (%p288) target = $region52
        $region51: #{tpu_custom_call.1} parent=47 // pred_region
          %291 = dma.done %s284, 1024
        $region52: #{tpu_custom_call.1} parent=47 // pred_fallthru
          _
        // Predicated region
        $region53: #{tpu_custom_call.1} parent=47 // pred_check
          %p292 = pneg %p67
        $region54: #{tpu_custom_call.1} parent=47 // pred_check_branch
          %294 = sbr.rel (%p292) target = $region56
        $region55: #{tpu_custom_call.1} parent=47 // pred_region
          %295 = dma.done [#allocation6], 4096
        $region56: #{tpu_custom_call.1} parent=47 // pred_fallthru
          _
        // Predicated region
        $region57: #{tpu_custom_call.1} parent=47 // pred_check
          %p296 = pneg %p109
        $region58: #{tpu_custom_call.1} parent=47 // pred_check_branch
          %298 = sbr.rel (%p296) target = $region60
        $region59: #{tpu_custom_call.1} parent=47 // pred_region
          %299 = dma.done [#allocation6], 4096
        $region60: #{tpu_custom_call.1} parent=47 // pred_fallthru
          _
        %s300 = sand.u32 %s33, 1
        %s301 = scalar_lea.sflag [#allocation3], %s300
        %s302 = sand.u32 %s33, 1
        %s303 = smul.addr %s302, 64
        %s304 = scalar_lea.vmem [#allocation2], %s303
        %p305 = pneg %p46
        %p306 = pneg %p43
        %p307 = pneg %p67
        %p308 = pneg %p64
        %p309 = pneg %p88
        %p310 = pneg %p85
        %p311 = pneg %p109
        %p312 = pneg %p106
        %p313 = pneg %p130
        %p314 = pneg %p127
        %p315 = pneg %p151
        %p316 = pneg %p148
        %p317 = pneg %p172
        %p318 = pneg %p169
        %p319 = pneg %p198
        %p320 = pneg %p195
        %s321 = sand.u32 %s185, 1
        %s322 = scalar_lea.sflag [#allocation4], %s321
        %s323 = sand.u32 %s185, 1
        %s324 = smul.addr %s323, 64
        %s325 = scalar_lea.vmem [#allocation8], %s324
        %s326 = smul.u32 8, %s25
        %s327 = smul.u32 8, %s25
        %v328 = vld [vmem:[%s287] sm:$0xff]
        %v329 = vld [vmem:[%s287 + $0x8] sm:$0xff]
        %v330 = vld [vmem:[%s287 + $0x10] sm:$0xff]
        %v331 = vld [vmem:[%s287 + $0x18] sm:$0xff]
        %v332 = vld [vmem:[%s287 + $0x20] sm:$0xff]
        %v333 = vld [vmem:[%s287 + $0x28] sm:$0xff]
        %v334 = vld [vmem:[%s287 + $0x30] sm:$0xff]
        %v335 = vld [vmem:[%s287 + $0x38] sm:$0xff]
        %v336 = vld [vmem:[#allocation5] sm:$0xff]
        %v337 = vld [vmem:[#allocation5 + $0x8] sm:$0xff]
        %v338 = vld [vmem:[#allocation5 + $0x10] sm:$0xff]
        %v339 = vld [vmem:[#allocation5 + $0x18] sm:$0xff]
        %v340 = vld [vmem:[#allocation5 + $0x20] sm:$0xff]
        %v341 = vld [vmem:[#allocation5 + $0x28] sm:$0xff]
        %v342 = vld [vmem:[#allocation5 + $0x30] sm:$0xff]
        %v343 = vld [vmem:[#allocation5 + $0x38] sm:$0xff]
        %v344 = vld [vmem:[#allocation5 + $0x40] sm:$0xff]
        %v345 = vld [vmem:[#allocation5 + $0x48] sm:$0xff]
        %v346 = vld [vmem:[#allocation5 + $0x50] sm:$0xff]
        %v347 = vld [vmem:[#allocation5 + $0x58] sm:$0xff]
        %v348 = vld [vmem:[#allocation5 + $0x60] sm:$0xff]
        %v349 = vld [vmem:[#allocation5 + $0x68] sm:$0xff]
        %v350 = vld [vmem:[#allocation5 + $0x70] sm:$0xff]
        %v351 = vld [vmem:[#allocation5 + $0x78] sm:$0xff]
        %v352 = vld [vmem:[#allocation5 + $0x80] sm:$0xff]
        %v353 = vld [vmem:[#allocation5 + $0x88] sm:$0xff]
        %v354 = vld [vmem:[#allocation5 + $0x90] sm:$0xff]
        %v355 = vld [vmem:[#allocation5 + $0x98] sm:$0xff]
        %v356 = vld [vmem:[#allocation5 + $0xa0] sm:$0xff]
        %v357 = vld [vmem:[#allocation5 + $0xa8] sm:$0xff]
        %v358 = vld [vmem:[#allocation5 + $0xb0] sm:$0xff]
        %v359 = vld [vmem:[#allocation5 + $0xb8] sm:$0xff]
        %v360 = vld [vmem:[#allocation5 + $0xc0] sm:$0xff]
        %v361 = vld [vmem:[#allocation5 + $0xc8] sm:$0xff]
        %v362 = vld [vmem:[#allocation5 + $0xd0] sm:$0xff]
        %v363 = vld [vmem:[#allocation5 + $0xd8] sm:$0xff]
        %v364 = vld [vmem:[#allocation5 + $0xe0] sm:$0xff]
        %v365 = vld [vmem:[#allocation5 + $0xe8] sm:$0xff]
        %v366 = vld [vmem:[#allocation5 + $0xf0] sm:$0xff]
        %v367 = vld [vmem:[#allocation5 + $0xf8] sm:$0xff]
        %v368 = vld [vmem:[%s2] sm:$0x3]
        %v370 = vlaneseq
        %v371 = vshrl.u32 %v370, 7
        %v372 = vsub.s32 0, %v371
        %v373 = vrot.slane %v368, %v372
        %v374 = vlaneseq
        %v375 = vshrl.u32 %v374, 7
        %v376 = vsub.s32 1, %v375
        %v377 = vrot.slane %v368, %v376
        %380 = vmatprep.subr.mxu0 %v337
        %381 = vmatpush1.msra.mxu0 %v336
        %382 = vmatprep.subr.mxu0 %v339
        %383 = vmatpush1.msra.mxu0 %v338
        %384 = vmatprep.subr.mxu0 %v341
        %385 = vmatpush1.msra.mxu0 %v340
        %386 = vmatprep.subr.mxu0 %v343
        %387 = vmatpush1.msra.mxu0 %v342
        %388 = vmatprep.subr.mxu0 %v345
        %389 = vmatpush1.msra.mxu0 %v344
        %390 = vmatprep.subr.mxu0 %v347
        %391 = vmatpush1.msra.mxu0 %v346
        %392 = vmatprep.subr.mxu0 %v349
        %393 = vmatpush1.msra.mxu0 %v348
        %394 = vmatprep.subr.mxu0 %v351
        %395 = vmatpush1.msra.mxu0 %v350
        %396 = vmatprep.subr.mxu0 %v353
        %397 = vmatpush1.msra.mxu0 %v352
        %398 = vmatprep.subr.mxu0 %v355
        %399 = vmatpush1.msra.mxu0 %v354
        %400 = vmatprep.subr.mxu0 %v357
        %401 = vmatpush1.msra.mxu0 %v356
        %402 = vmatprep.subr.mxu0 %v359
        %403 = vmatpush1.msra.mxu0 %v358
        %404 = vmatprep.subr.mxu0 %v361
        %405 = vmatpush1.msra.mxu0 %v360
        %406 = vmatprep.subr.mxu0 %v363
        %407 = vmatpush1.msra.mxu0 %v362
        %408 = vmatprep.subr.mxu0 %v365
        %409 = vmatpush1.msra.mxu0 %v364
        %410 = vmatprep.subr.mxu0 %v367
        %411 = vmatpush1.msra.mxu0 %v366
        %412 = vmatprep.subr.mxu0 0.0
        %413 = vmatpush1.msra.mxu0 0.0
        %414 = vmatprep.subr.mxu0 0.0
        %415 = vmatpush1.msra.mxu0 0.0
        %416 = vmatprep.subr.mxu0 0.0
        %417 = vmatpush1.msra.mxu0 0.0
        %418 = vmatprep.subr.mxu0 0.0
        %419 = vmatpush1.msra.mxu0 0.0
        %420 = vmatprep.subr.mxu0 0.0
        %421 = vmatpush1.msra.mxu0 0.0
        %422 = vmatprep.subr.mxu0 0.0
        %423 = vmatpush1.msra.mxu0 0.0
        %424 = vmatprep.subr.mxu0 0.0
        %425 = vmatpush1.msra.mxu0 0.0
        %426 = vmatprep.subr.mxu0 0.0
        %427 = vmatpush1.msra.mxu0 0.0
        %428 = vmatprep.subr.mxu0 0.0
        %429 = vmatpush1.msra.mxu0 0.0
        %430 = vmatprep.subr.mxu0 0.0
        %431 = vmatpush1.msra.mxu0 0.0
        %432 = vmatprep.subr.mxu0 0.0
        %433 = vmatpush1.msra.mxu0 0.0
        %434 = vmatprep.subr.mxu0 0.0
        %435 = vmatpush1.msra.mxu0 0.0
        %436 = vmatprep.subr.mxu0 0.0
        %437 = vmatpush1.msra.mxu0 0.0
        %438 = vmatprep.subr.mxu0 0.0
        %439 = vmatpush1.msra.mxu0 0.0
        %440 = vmatprep.subr.mxu0 0.0
        %441 = vmatpush1.msra.mxu0 0.0
        %442 = vmatprep.subr.mxu0 0.0
        %443 = vmatpush1.msra.mxu0 0.0
        %444 = vmatprep.mubr.f32.mxu0 0.0
        %445 = vmatmul.mubr.f32.gmra.mrb[0].mxu0 %v328
        %v446 = vpop.f32.mrb[0].mxu0
        %v447 = vadd.f32 %v373, %v446
        %v448 = vpop.f32.mrb[0].mxu0
        %v449 = vadd.f32 %v377, %v448
        %450 = vmatprep.mubr.f32.mxu0 0.0
        %451 = vmatmul.mubr.f32.gmra.mrb[0].mxu0 %v329
        %v452 = vpop.f32.mrb[0].mxu0
        %v453 = vadd.f32 %v373, %v452
        %v454 = vpop.f32.mrb[0].mxu0
        %v455 = vadd.f32 %v377, %v454
        %456 = vmatprep.mubr.f32.mxu0 0.0
        %457 = vmatmul.mubr.f32.gmra.mrb[0].mxu0 %v330
        %v458 = vpop.f32.mrb[0].mxu0
        %v459 = vadd.f32 %v373, %v458
        %v460 = vpop.f32.mrb[0].mxu0
        %v461 = vadd.f32 %v377, %v460
        %462 = vmatprep.mubr.f32.mxu0 0.0
        %463 = vmatmul.mubr.f32.gmra.mrb[0].mxu0 %v331
        %v464 = vpop.f32.mrb[0].mxu0
        %v465 = vadd.f32 %v373, %v464
        %v466 = vpop.f32.mrb[0].mxu0
        %v467 = vadd.f32 %v377, %v466
        %468 = vmatprep.mubr.f32.mxu0 0.0
        %469 = vmatmul.mubr.f32.gmra.mrb[0].mxu0 %v332
        %v470 = vpop.f32.mrb[0].mxu0
        %v471 = vadd.f32 %v373, %v470
        %v472 = vpop.f32.mrb[0].mxu0
        %v473 = vadd.f32 %v377, %v472
        %474 = vmatprep.mubr.f32.mxu0 0.0
        %475 = vmatmul.mubr.f32.gmra.mrb[0].mxu0 %v333
        %v476 = vpop.f32.mrb[0].mxu0
        %v477 = vadd.f32 %v373, %v476
        %v478 = vpop.f32.mrb[0].mxu0
        %v479 = vadd.f32 %v377, %v478
        %480 = vmatprep.mubr.f32.mxu0 0.0
        %481 = vmatmul.mubr.f32.gmra.mrb[0].mxu0 %v334
        %v482 = vpop.f32.mrb[0].mxu0
        %v483 = vadd.f32 %v373, %v482
        %v484 = vpop.f32.mrb[0].mxu0
        %v485 = vadd.f32 %v377, %v484
        %486 = vmatprep.mubr.f32.mxu0 0.0
        %487 = vmatmul.mubr.f32.gmra.mrb[0].mxu0 %v335
        %v488 = vpop.f32.mrb[0].mxu0
        %v489 = vadd.f32 %v373, %v488
        %v490 = vpop.f32.mrb[0].mxu0
        %v491 = vadd.f32 %v377, %v490
        %492 = vdwg.mxu0
        %v493 = vmax.f32 %v447, 0.0
        %v494 = vmax.f32 %v449, 0.0
        %v495 = vmax.f32 %v453, 0.0
        %v496 = vmax.f32 %v455, 0.0
        %v497 = vmax.f32 %v459, 0.0
        %v498 = vmax.f32 %v461, 0.0
        %v499 = vmax.f32 %v465, 0.0
        %v500 = vmax.f32 %v467, 0.0
        %v501 = vmax.f32 %v471, 0.0
        %v502 = vmax.f32 %v473, 0.0
        %v503 = vmax.f32 %v477, 0.0
        %v504 = vmax.f32 %v479, 0.0
        %v505 = vmax.f32 %v483, 0.0
        %v506 = vmax.f32 %v485, 0.0
        %v507 = vmax.f32 %v489, 0.0
        %v508 = vmax.f32 %v491, 0.0
        %v509 = vld [vmem:[#allocation7] sm:$0xff]
        %v510 = vld [vmem:[#allocation7 + $0x8] sm:$0xff]
        %v511 = vld [vmem:[#allocation7 + $0x10] sm:$0xff]
        %v512 = vld [vmem:[#allocation7 + $0x18] sm:$0xff]
        %v513 = vld [vmem:[#allocation7 + $0x20] sm:$0xff]
        %v514 = vld [vmem:[#allocation7 + $0x28] sm:$0xff]
        %v515 = vld [vmem:[#allocation7 + $0x30] sm:$0xff]
        %v516 = vld [vmem:[#allocation7 + $0x38] sm:$0xff]
        %v517 = vld [vmem:[#allocation7 + $0x40] sm:$0xff]
        %v518 = vld [vmem:[#allocation7 + $0x48] sm:$0xff]
        %v519 = vld [vmem:[#allocation7 + $0x50] sm:$0xff]
        %v520 = vld [vmem:[#allocation7 + $0x58] sm:$0xff]
        %v521 = vld [vmem:[#allocation7 + $0x60] sm:$0xff]
        %v522 = vld [vmem:[#allocation7 + $0x68] sm:$0xff]
        %v523 = vld [vmem:[#allocation7 + $0x70] sm:$0xff]
        %v524 = vld [vmem:[#allocation7 + $0x78] sm:$0xff]
        %v525 = vld [vmem:[#allocation7 + $0x80] sm:$0xff]
        %v526 = vld [vmem:[#allocation7 + $0x88] sm:$0xff]
        %v527 = vld [vmem:[#allocation7 + $0x90] sm:$0xff]
        %v528 = vld [vmem:[#allocation7 + $0x98] sm:$0xff]
        %v529 = vld [vmem:[#allocation7 + $0xa0] sm:$0xff]
        %v530 = vld [vmem:[#allocation7 + $0xa8] sm:$0xff]
        %v531 = vld [vmem:[#allocation7 + $0xb0] sm:$0xff]
        %v532 = vld [vmem:[#allocation7 + $0xb8] sm:$0xff]
        %v533 = vld [vmem:[#allocation7 + $0xc0] sm:$0xff]
        %v534 = vld [vmem:[#allocation7 + $0xc8] sm:$0xff]
        %v535 = vld [vmem:[#allocation7 + $0xd0] sm:$0xff]
        %v536 = vld [vmem:[#allocation7 + $0xd8] sm:$0xff]
        %v537 = vld [vmem:[#allocation7 + $0xe0] sm:$0xff]
        %v538 = vld [vmem:[#allocation7 + $0xe8] sm:$0xff]
        %v539 = vld [vmem:[#allocation7 + $0xf0] sm:$0xff]
        %v540 = vld [vmem:[#allocation7 + $0xf8] sm:$0xff]
        %v541 = vld [vmem:[%s4] sm:$0x1]
        %v543 = vlaneseq
        %v544 = vshrl.u32 %v543, 7
        %v545 = vsub.s32 0, %v544
        %v546 = vrot.slane %v541, %v545
        %548 = vmatprep.subr.mxu0 0.0
        %549 = vmatpush1.msra.mxu0 %v509
        %550 = vmatprep.subr.mxu0 0.0
        %551 = vmatpush1.msra.mxu0 %v510
        %552 = vmatprep.subr.mxu0 0.0
        %553 = vmatpush1.msra.mxu0 %v511
        %554 = vmatprep.subr.mxu0 0.0
        %555 = vmatpush1.msra.mxu0 %v512
        %556 = vmatprep.subr.mxu0 0.0
        %557 = vmatpush1.msra.mxu0 %v513
        %558 = vmatprep.subr.mxu0 0.0
        %559 = vmatpush1.msra.mxu0 %v514
        %560 = vmatprep.subr.mxu0 0.0
        %561 = vmatpush1.msra.mxu0 %v515
        %562 = vmatprep.subr.mxu0 0.0
        %563 = vmatpush1.msra.mxu0 %v516
        %564 = vmatprep.subr.mxu0 0.0
        %565 = vmatpush1.msra.mxu0 %v517
        %566 = vmatprep.subr.mxu0 0.0
        %567 = vmatpush1.msra.mxu0 %v518
        %568 = vmatprep.subr.mxu0 0.0
        %569 = vmatpush1.msra.mxu0 %v519
        %570 = vmatprep.subr.mxu0 0.0
        %571 = vmatpush1.msra.mxu0 %v520
        %572 = vmatprep.subr.mxu0 0.0
        %573 = vmatpush1.msra.mxu0 %v521
        %574 = vmatprep.subr.mxu0 0.0
        %575 = vmatpush1.msra.mxu0 %v522
        %576 = vmatprep.subr.mxu0 0.0
        %577 = vmatpush1.msra.mxu0 %v523
        %578 = vmatprep.subr.mxu0 0.0
        %579 = vmatpush1.msra.mxu0 %v524
        %580 = vmatprep.subr.mxu0 0.0
        %581 = vmatpush1.msra.mxu0 %v525
        %582 = vmatprep.subr.mxu0 0.0
        %583 = vmatpush1.msra.mxu0 %v526
        %584 = vmatprep.subr.mxu0 0.0
        %585 = vmatpush1.msra.mxu0 %v527
        %586 = vmatprep.subr.mxu0 0.0
        %587 = vmatpush1.msra.mxu0 %v528
        %588 = vmatprep.subr.mxu0 0.0
        %589 = vmatpush1.msra.mxu0 %v529
        %590 = vmatprep.subr.mxu0 0.0
        %591 = vmatpush1.msra.mxu0 %v530
        %592 = vmatprep.subr.mxu0 0.0
        %593 = vmatpush1.msra.mxu0 %v531
        %594 = vmatprep.subr.mxu0 0.0
        %595 = vmatpush1.msra.mxu0 %v532
        %596 = vmatprep.subr.mxu0 0.0
        %597 = vmatpush1.msra.mxu0 %v533
        %598 = vmatprep.subr.mxu0 0.0
        %599 = vmatpush1.msra.mxu0 %v534
        %600 = vmatprep.subr.mxu0 0.0
        %601 = vmatpush1.msra.mxu0 %v535
        %602 = vmatprep.subr.mxu0 0.0
        %603 = vmatpush1.msra.mxu0 %v536
        %604 = vmatprep.subr.mxu0 0.0
        %605 = vmatpush1.msra.mxu0 %v537
        %606 = vmatprep.subr.mxu0 0.0
        %607 = vmatpush1.msra.mxu0 %v538
        %608 = vmatprep.subr.mxu0 0.0
        %609 = vmatpush1.msra.mxu0 %v539
        %610 = vmatprep.subr.mxu0 0.0
        %611 = vmatpush1.msra.mxu0 %v540
        %612 = vmatprep.mubr.f32.mxu0 %v494
        %613 = vmatmul.mubr.f32.gmra.mrb[0].mxu0 %v493
        %v614 = vpop.f32.mrb[0].mxu0
        %v615 = vadd.f32 %v546, %v614
        %v616 = vpop.f32.mrb[0].mxu0
        %617 = vmatprep.mubr.f32.mxu0 %v496
        %618 = vmatmul.mubr.f32.gmra.mrb[0].mxu0 %v495
        %v619 = vpop.f32.mrb[0].mxu0
        %v620 = vadd.f32 %v546, %v619
        %v621 = vpop.f32.mrb[0].mxu0
        %622 = vmatprep.mubr.f32.mxu0 %v498
        %623 = vmatmul.mubr.f32.gmra.mrb[0].mxu0 %v497
        %v624 = vpop.f32.mrb[0].mxu0
        %v625 = vadd.f32 %v546, %v624
        %v626 = vpop.f32.mrb[0].mxu0
        %627 = vmatprep.mubr.f32.mxu0 %v500
        %628 = vmatmul.mubr.f32.gmra.mrb[0].mxu0 %v499
        %v629 = vpop.f32.mrb[0].mxu0
        %v630 = vadd.f32 %v546, %v629
        %v631 = vpop.f32.mrb[0].mxu0
        %632 = vmatprep.mubr.f32.mxu0 %v502
        %633 = vmatmul.mubr.f32.gmra.mrb[0].mxu0 %v501
        %v634 = vpop.f32.mrb[0].mxu0
        %v635 = vadd.f32 %v546, %v634
        %v636 = vpop.f32.mrb[0].mxu0
        %637 = vmatprep.mubr.f32.mxu0 %v504
        %638 = vmatmul.mubr.f32.gmra.mrb[0].mxu0 %v503
        %v639 = vpop.f32.mrb[0].mxu0
        %v640 = vadd.f32 %v546, %v639
        %v641 = vpop.f32.mrb[0].mxu0
        %642 = vmatprep.mubr.f32.mxu0 %v506
        %643 = vmatmul.mubr.f32.gmra.mrb[0].mxu0 %v505
        %v644 = vpop.f32.mrb[0].mxu0
        %v645 = vadd.f32 %v546, %v644
        %v646 = vpop.f32.mrb[0].mxu0
        %647 = vmatprep.mubr.f32.mxu0 %v508
        %648 = vmatmul.mubr.f32.gmra.mrb[0].mxu0 %v507
        %v649 = vpop.f32.mrb[0].mxu0
        %v650 = vadd.f32 %v546, %v649
        %v651 = vpop.f32.mrb[0].mxu0
        %652 = vdwg.mxu0
        %v653 = vadd.f32 %v328, %v615
        %v654 = vadd.f32 %v329, %v620
        %v655 = vadd.f32 %v330, %v625
        %v656 = vadd.f32 %v331, %v630
        %v657 = vadd.f32 %v332, %v635
        %v658 = vadd.f32 %v333, %v640
        %v659 = vadd.f32 %v334, %v645
        %v660 = vadd.f32 %v335, %v650
        %661 = vadd.xlane.f32.xlu0 %v653
        %v662 = vpop.xlane.xlu0 %661
        %663 = vadd.xlane.f32.xlu0 %v654
        %v664 = vpop.xlane.xlu0 %663
        %665 = vadd.xlane.f32.xlu0 %v655
        %v666 = vpop.xlane.xlu0 %665
        %667 = vadd.xlane.f32.xlu0 %v656
        %v668 = vpop.xlane.xlu0 %667
        %669 = vadd.xlane.f32.xlu0 %v657
        %v670 = vpop.xlane.xlu0 %669
        %671 = vadd.xlane.f32.xlu0 %v658
        %v672 = vpop.xlane.xlu0 %671
        %673 = vadd.xlane.f32.xlu0 %v659
        %v674 = vpop.xlane.xlu0 %673
        %675 = vadd.xlane.f32.xlu0 %v660
        %v676 = vpop.xlane.xlu0 %675
        %v677 = vrcp.pop 128.0
        %v678 = vmul.f32 %v662, %v677
        %v679 = vmul.f32 %v664, %v677
        %v680 = vmul.f32 %v666, %v677
        %v681 = vmul.f32 %v668, %v677
        %v682 = vmul.f32 %v670, %v677
        %v683 = vmul.f32 %v672, %v677
        %v684 = vmul.f32 %v674, %v677
        %v685 = vmul.f32 %v676, %v677
        %v686 = vsub.f32 %v653, %v678
        %v687 = vsub.f32 %v654, %v679
        %v688 = vsub.f32 %v655, %v680
        %v689 = vsub.f32 %v656, %v681
        %v690 = vsub.f32 %v657, %v682
        %v691 = vsub.f32 %v658, %v683
        %v692 = vsub.f32 %v659, %v684
        %v693 = vsub.f32 %v660, %v685
        %v694 = vmul.f32 %v686, %v686
        %v695 = vmul.f32 %v687, %v687
        %v696 = vmul.f32 %v688, %v688
        %v697 = vmul.f32 %v689, %v689
        %v698 = vmul.f32 %v690, %v690
        %v699 = vmul.f32 %v691, %v691
        %v700 = vmul.f32 %v692, %v692
        %v701 = vmul.f32 %v693, %v693
        %702 = vadd.xlane.f32.xlu0 %v694
        %v703 = vpop.xlane.xlu0 %702
        %704 = vadd.xlane.f32.xlu0 %v695
        %v705 = vpop.xlane.xlu0 %704
        %706 = vadd.xlane.f32.xlu0 %v696
        %v707 = vpop.xlane.xlu0 %706
        %708 = vadd.xlane.f32.xlu0 %v697
        %v709 = vpop.xlane.xlu0 %708
        %710 = vadd.xlane.f32.xlu0 %v698
        %v711 = vpop.xlane.xlu0 %710
        %712 = vadd.xlane.f32.xlu0 %v699
        %v713 = vpop.xlane.xlu0 %712
        %714 = vadd.xlane.f32.xlu0 %v700
        %v715 = vpop.xlane.xlu0 %714
        %716 = vadd.xlane.f32.xlu0 %v701
        %v717 = vpop.xlane.xlu0 %716
        %v718 = vmul.f32 %v703, %v677
        %v719 = vmul.f32 %v705, %v677
        %v720 = vmul.f32 %v707, %v677
        %v721 = vmul.f32 %v709, %v677
        %v722 = vmul.f32 %v711, %v677
        %v723 = vmul.f32 %v713, %v677
        %v724 = vmul.f32 %v715, %v677
        %v725 = vmul.f32 %v717, %v677
        %v726 = vadd.f32 %v718, 1e-05
        %v727 = vadd.f32 %v719, 1e-05
        %v728 = vadd.f32 %v720, 1e-05
        %v729 = vadd.f32 %v721, 1e-05
        %v730 = vadd.f32 %v722, 1e-05
        %v731 = vadd.f32 %v723, 1e-05
        %v732 = vadd.f32 %v724, 1e-05
        %v733 = vadd.f32 %v725, 1e-05
        %v734 = vrsqrt.pop %v726
        %v735 = vrsqrt.pop %v727
        %v736 = vrsqrt.pop %v728
        %v737 = vrsqrt.pop %v729
        %v738 = vrsqrt.pop %v730
        %v739 = vrsqrt.pop %v731
        %v740 = vrsqrt.pop %v732
        %v741 = vrsqrt.pop %v733
        %v742 = vmul.f32 %v686, %v734
        %v743 = vmul.f32 %v687, %v735
        %v744 = vmul.f32 %v688, %v736
        %v745 = vmul.f32 %v689, %v737
        %v746 = vmul.f32 %v690, %v738
        %v747 = vmul.f32 %v691, %v739
        %v748 = vmul.f32 %v692, %v740
        %v749 = vmul.f32 %v693, %v741
        %v750 = vld [vmem:[%s5] sm:$0x1]
        %v752 = vlaneseq
        %v753 = vshrl.u32 %v752, 7
        %v754 = vsub.s32 0, %v753
        %v755 = vrot.slane %v750, %v754
        %v757 = vmul.f32 %v742, %v755
        %v758 = vmul.f32 %v743, %v755
        %v759 = vmul.f32 %v744, %v755
        %v760 = vmul.f32 %v745, %v755
        %v761 = vmul.f32 %v746, %v755
        %v762 = vmul.f32 %v747, %v755
        %v763 = vmul.f32 %v748, %v755
        %v764 = vmul.f32 %v749, %v755
        %v765 = vld [vmem:[%s6] sm:$0x1]
        %v767 = vlaneseq
        %v768 = vshrl.u32 %v767, 7
        %v769 = vsub.s32 0, %v768
        %v770 = vrot.slane %v765, %v769
        %v772 = vadd.f32 %v757, %v770
        %v773 = vadd.f32 %v758, %v770
        %v774 = vadd.f32 %v759, %v770
        %v775 = vadd.f32 %v760, %v770
        %v776 = vadd.f32 %v761, %v770
        %v777 = vadd.f32 %v762, %v770
        %v778 = vadd.f32 %v763, %v770
        %v779 = vadd.f32 %v764, %v770
        %780 = vst [vmem:[%s325] sm:$0xff] %v772
        %781 = vst [vmem:[%s325 + $0x8] sm:$0xff] %v773
        %782 = vst [vmem:[%s325 + $0x10] sm:$0xff] %v774
        %783 = vst [vmem:[%s325 + $0x18] sm:$0xff] %v775
        %784 = vst [vmem:[%s325 + $0x20] sm:$0xff] %v776
        %785 = vst [vmem:[%s325 + $0x28] sm:$0xff] %v777
        %786 = vst [vmem:[%s325 + $0x30] sm:$0xff] %v778
        %787 = vst [vmem:[%s325 + $0x38] sm:$0xff] %v779
        %s788 = sand.u32 %s185, 1
        %s789 = scalar_lea.sflag [#allocation4], %s788
        %s790 = sand.u32 %s185, 1
        %s791 = smul.addr %s790, 64
        %s792 = scalar_lea.vmem [#allocation8], %s791
        // Predicated region
        $region61: #{tpu_custom_call.1} parent=47 // pred_check
          %p793 = pneg %p195
        $region62: #{tpu_custom_call.1} parent=47 // pred_check_branch
          %795 = sbr.rel (%p793) target = $region64
        $region63: #{tpu_custom_call.1} parent=47 // pred_region
          %s796 = smul.u32 8, %s25
          %s798 = ssub.s32 1024, 1024
          %799 = vsyncadd %s789, %s798
          %s800 = smul.addr %s796, 128
          %s801 = scalar_lea.hbm %s7, %s800
          %s802 = sshll.u32 %s792, 4
          %s803 = int_to_ptr.vmem [resolvable:$true] %s802
          %808 = dma.vmem_to_hbm [thread:$0]  %s803, 1024, %s801, %s789, 128, 128, 8
        $region64: #{tpu_custom_call.1} parent=47 // pred_fallthru
          _
      $region48: #{tpu_custom_call.1} parent=5 // pred_fallthru
        _
      %p809 = scmp.le.s32.totalorder 2, %s20
      // Predicated region
      $region65: #{tpu_custom_call.1} parent=5 // pred_check
        %p810 = pneg %p809
      $region66: #{tpu_custom_call.1} parent=5 // pred_check_branch
        %812 = sbr.rel (%p810) target = $region68
      $region67: #{tpu_custom_call.1} parent=5 // pred_region
        %s813 = ssub.s32 %s20, 2
        // Predicated region
        $region69: #{tpu_custom_call.1} parent=67 // pred_check
          %p814 = pneg %p201
        $region70: #{tpu_custom_call.1} parent=67 // pred_check_branch
          %816 = sbr.rel (%p814) target = $region72
        $region71: #{tpu_custom_call.1} parent=67 // pred_region
          %s817 = sand.u32 %s186, 1
          %s818 = scalar_lea.sflag [#allocation4], %s817
          %s819 = sand.u32 %s186, 1
          %s820 = smul.addr %s819, 64
          %s821 = scalar_lea.vmem [#allocation8], %s820
          %822 = dma.done %s818, 1024
        $region72: #{tpu_custom_call.1} parent=67 // pred_fallthru
          _
      $region68: #{tpu_custom_call.1} parent=5 // pred_fallthru
        _
    $region6: #{tpu_custom_call.1} parent=1 // loop_footer
      %s24 = sadd.s32 1, %s20
    $region7: #{tpu_custom_call.1} parent=1 // loop_footer_branch
      %19 = sbr.rel target = $region3
    $region8: #{tpu_custom_call.1} parent=1 // loop_exit
      _
    %823 = vsyncpa [#allocation3], 1
    %s824 = scalar_lea.sflag [#allocation3], 1
    %825 = vsyncpa %s824, 1
    %826 = vsyncpa [#allocation6], 1
    %827 = vsyncpa [#allocation4], 1
    %s828 = scalar_lea.sflag [#allocation4], 1
    %829 = vsyncpa %s828, 1

// kernel: tpu_custom_call.1
$region0: #{tpu_custom_call.1}
  #allocation0 [shape = 'u32[]', space=smem, size = 0x4, offset = 0x4, fixed_abs, tag = 'smem constant byte address 0x4 - core index']
  #allocation1 [shape = 'u32[144,128]{1,0:T(1,128)}', space=vmem, size = 0x12000, scoped, tag = 'internal scratch']
  %s0 = inlined_call_operand.hbm [shape: f32[128,128], index: 0, kind: input, shape index: {}]
  %s1 = inlined_call_operand.hbm [shape: f32[128,256], index: 1, kind: input, shape index: {}]
  %s2 = inlined_call_operand.vmem [shape: f32[1,256], index: 2, kind: input, shape index: {}]
  %s3 = inlined_call_operand.hbm [shape: f32[256,128], index: 3, kind: input, shape index: {}]
  %s4 = inlined_call_operand.vmem [shape: f32[1,128], index: 4, kind: input, shape index: {}]
  %s5 = inlined_call_operand.vmem [shape: f32[1,128], index: 5, kind: input, shape index: {}]
  %s6 = inlined_call_operand.vmem [shape: f32[1,128], index: 6, kind: input, shape index: {}]
  %s7 = inlined_call_operand.hbm [shape: f32[128,128], index: 7, kind: output, shape index: {}]
  %s8 = sld [smem:[#allocation0]]
  $region73: #{tpu_custom_call.1} parent=0
    _
  %s10 = ssub.s32 1, %s8
  %s11 = scalar_select 0, %s10, %s8
  $region1: #{tpu_custom_call.1} parent=0
    #allocation2 [shape = 'u8[65536]{0}', space=vmem, size = 0x10000, scoped, tag = 'input window, operand 0']
    #allocation3 [shape = 's32[2]{0}', space=sflag, size = 0x8, scoped, tag = 'scoped memory for tpu_custom_call.1']
    #allocation4 [shape = 's32[2]{0}', space=sflag, size = 0x8, scoped, tag = 'scoped memory for tpu_custom_call.1']
    #allocation5 [shape = 'u8[131072]{0}', space=vmem, size = 0x20000, scoped, tag = 'input window, operand 1, single buffered']
    #allocation6 [shape = 's32[1]{0}', space=sflag, size = 0x4, scoped, tag = 'scoped memory for tpu_custom_call.1']
    #allocation7 [shape = 'u8[131072]{0}', space=vmem, size = 0x20000, scoped, tag = 'input window, operand 3, single buffered']
    #allocation8 [shape = 'u8[65536]{0}', space=vmem, size = 0x10000, scoped, tag = 'output window, operand 0']
    %12 = vsyncpa [#allocation3], 0
    %s13 = scalar_lea.sflag [#allocation3], 1
    %14 = vsyncpa %s13, 0
    %15 = vsyncpa [#allocation6], 0
    %16 = vsyncpa [#allocation4], 0
    %s17 = scalar_lea.sflag [#allocation4], 1
    %18 = vsyncpa %s17, 0
    loop: start=0, step=1, limit=4
    $region2: #{tpu_custom_call.1} parent=1 // loop_pre_header
      _
    $region3: #{tpu_custom_call.1} parent=1 // loop_header
      %s20 = sphi 0, %s24
      %p21 = scmp.ge.s32.totalorder %s20, 4
      %s30 = sphi 0, %s32
      %s33 = sphi 0, %s30
      %s34 = sphi 0, %s33
      %s50 = sphi 0, %s34
      %s54 = sphi 0, %s54
      %s56 = sphi 0, %s54
      %s57 = sphi 0, %s56
      %s71 = sphi 0, %s57
      %s75 = sphi 0, %s75
      %s77 = sphi 0, %s75
      %s78 = sphi 0, %s77
      %s92 = sphi 0, %s78
      %s96 = sphi 0, %s96
      %s98 = sphi 0, %s96
      %s99 = sphi 0, %s98
      %s113 = sphi 0, %s99
      %s117 = sphi 0, %s117
      %s119 = sphi 0, %s117
      %s120 = sphi 0, %s119
      %s134 = sphi 0, %s120
      %s138 = sphi 0, %s138
      %s140 = sphi 0, %s138
      %s141 = sphi 0, %s140
      %s155 = sphi 0, %s141
      %s159 = sphi 0, %s159
      %s161 = sphi 0, %s159
      %s162 = sphi 0, %s161
      %s176 = sphi 0, %s162
      %s182 = sphi 0, %s184
      %s185 = sphi 0, %s182
      %s186 = sphi 0, %s185
      %s202 = sphi 0, %s186
    $region4: #{tpu_custom_call.1} parent=1 // loop_header_branch
      %23 = sbr.rel (%p21) target = $region8
    $region5: #{tpu_custom_call.1} parent=1 // loop_body
      %s25 = ssub.s32 %s20, 1
      %s26 = ssub.s32 %s20, 2
      %s27 = sadd.s32 %s20, 1
      %s28 = ssub.s32 %s20, %s27
      %p29 = scmp.eq.s32.totalorder %s28, 0
      %s31 = sadd.s32 %s30, 1
      %s32 = scalar_select %p29, %s30, %s31
      %p35 = pneg %p29
      %p36 = scmp.eq.s32.totalorder %s20, 1
      %p37 = por %p35, %p36
      %p38 = scmp.ne.s32.totalorder %s30, %s33
      %p39 = scmp.eq.s32.totalorder %s20, 0
      %p40 = por %p38, %p39
      %p41 = scmp.ne.s32.totalorder %s30, %s33
      %p42 = scmp.eq.s32.totalorder %s25, 1
      %p43 = por %p41, %p42
      %p44 = scmp.ne.s32.totalorder %s33, %s34
      %p45 = scmp.eq.s32.totalorder %s25, 0
      %p46 = por %p44, %p45
      %p47 = scmp.ne.s32.totalorder %s33, %s34
      %p48 = scmp.eq.s32.totalorder %s26, 1
      %p49 = por %p47, %p48
      %p51 = scmp.ne.s32.totalorder %s34, %s50
      %p52 = scmp.eq.s32.totalorder %s26, 0
      %p53 = por %p51, %p52
      %s55 = sadd.s32 %s54, 1
      %p58 = scmp.eq.s32.totalorder %s20, 1
      %p59 = scmp.ne.s32.totalorder %s54, %s56
      %p60 = scmp.eq.s32.totalorder %s20, 0
      %p61 = por %p59, %p60
      %p62 = scmp.ne.s32.totalorder %s54, %s56
      %p63 = scmp.eq.s32.totalorder %s25, 1
      %p64 = por %p62, %p63
      %p65 = scmp.ne.s32.totalorder %s56, %s57
      %p66 = scmp.eq.s32.totalorder %s25, 0
      %p67 = por %p65, %p66
      %p68 = scmp.ne.s32.totalorder %s56, %s57
      %p69 = scmp.eq.s32.totalorder %s26, 1
      %p70 = por %p68, %p69
      %p72 = scmp.ne.s32.totalorder %s57, %s71
      %p73 = scmp.eq.s32.totalorder %s26, 0
      %p74 = por %p72, %p73
      %s76 = sadd.s32 %s75, 1
      %p79 = scmp.eq.s32.totalorder %s20, 1
      %p80 = scmp.ne.s32.totalorder %s75, %s77
      %p81 = scmp.eq.s32.totalorder %s20, 0
      %p82 = por %p80, %p81
      %p83 = scmp.ne.s32.totalorder %s75, %s77
      %p84 = scmp.eq.s32.totalorder %s25, 1
      %p85 = por %p83, %p84
      %p86 = scmp.ne.s32.totalorder %s77, %s78
      %p87 = scmp.eq.s32.totalorder %s25, 0
      %p88 = por %p86, %p87
      %p89 = scmp.ne.s32.totalorder %s77, %s78
      %p90 = scmp.eq.s32.totalorder %s26, 1
      %p91 = por %p89, %p90
      %p93 = scmp.ne.s32.totalorder %s78, %s92
      %p94 = scmp.eq.s32.totalorder %s26, 0
      %p95 = por %p93, %p94
      %s97 = sadd.s32 %s96, 1
      %p100 = scmp.eq.s32.totalorder %s20, 1
      %p101 = scmp.ne.s32.totalorder %s96, %s98
      %p102 = scmp.eq.s32.totalorder %s20, 0
      %p103 = por %p101, %p102
      %p104 = scmp.ne.s32.totalorder %s96, %s98
      %p105 = scmp.eq.s32.totalorder %s25, 1
      %p106 = por %p104, %p105
      %p107 = scmp.ne.s32.totalorder %s98, %s99
      %p108 = scmp.eq.s32.totalorder %s25, 0
      %p109 = por %p107, %p108
      %p110 = scmp.ne.s32.totalorder %s98, %s99
      %p111 = scmp.eq.s32.totalorder %s26, 1
      %p112 = por %p110, %p111
      %p114 = scmp.ne.s32.totalorder %s99, %s113
      %p115 = scmp.eq.s32.totalorder %s26, 0
      %p116 = por %p114, %p115
      %s118 = sadd.s32 %s117, 1
      %p121 = scmp.eq.s32.totalorder %s20, 1
      %p122 = scmp.ne.s32.totalorder %s117, %s119
      %p123 = scmp.eq.s32.totalorder %s20, 0
      %p124 = por %p122, %p123
      %p125 = scmp.ne.s32.totalorder %s117, %s119
      %p126 = scmp.eq.s32.totalorder %s25, 1
      %p127 = por %p125, %p126
      %p128 = scmp.ne.s32.totalorder %s119, %s120
      %p129 = scmp.eq.s32.totalorder %s25, 0
      %p130 = por %p128, %p129
      %p131 = scmp.ne.s32.totalorder %s119, %s120
      %p132 = scmp.eq.s32.totalorder %s26, 1
      %p133 = por %p131, %p132
      %p135 = scmp.ne.s32.totalorder %s120, %s134
      %p136 = scmp.eq.s32.totalorder %s26, 0
      %p137 = por %p135, %p136
      %s139 = sadd.s32 %s138, 1
      %p142 = scmp.eq.s32.totalorder %s20, 1
      %p143 = scmp.ne.s32.totalorder %s138, %s140
      %p144 = scmp.eq.s32.totalorder %s20, 0
      %p145 = por %p143, %p144
      %p146 = scmp.ne.s32.totalorder %s138, %s140
      %p147 = scmp.eq.s32.totalorder %s25, 1
      %p148 = por %p146, %p147
      %p149 = scmp.ne.s32.totalorder %s140, %s141
      %p150 = scmp.eq.s32.totalorder %s25, 0
      %p151 = por %p149, %p150
      %p152 = scmp.ne.s32.totalorder %s140, %s141
      %p153 = scmp.eq.s32.totalorder %s26, 1
      %p154 = por %p152, %p153
      %p156 = scmp.ne.s32.totalorder %s141, %s155
      %p157 = scmp.eq.s32.totalorder %s26, 0
      %p158 = por %p156, %p157
      %s160 = sadd.s32 %s159, 1
      %p163 = scmp.eq.s32.totalorder %s20, 1
      %p164 = scmp.ne.s32.totalorder %s159, %s161
      %p165 = scmp.eq.s32.totalorder %s20, 0
      %p166 = por %p164, %p165
      %p167 = scmp.ne.s32.totalorder %s159, %s161
      %p168 = scmp.eq.s32.totalorder %s25, 1
      %p169 = por %p167, %p168
      %p170 = scmp.ne.s32.totalorder %s161, %s162
      %p171 = scmp.eq.s32.totalorder %s25, 0
      %p172 = por %p170, %p171
      %p173 = scmp.ne.s32.totalorder %s161, %s162
      %p174 = scmp.eq.s32.totalorder %s26, 1
      %p175 = por %p173, %p174
      %p177 = scmp.ne.s32.totalorder %s162, %s176
      %p178 = scmp.eq.s32.totalorder %s26, 0
      %p179 = por %p177, %p178
      %s180 = ssub.s32 %s20, %s27
      %p181 = scmp.eq.s32.totalorder %s180, 0
      %s183 = sadd.s32 %s182, 1
      %s184 = scalar_select %p181, %s182, %s183
      %p187 = pneg %p181
      %p188 = scmp.eq.s32.totalorder %s20, 1
      %p189 = por %p187, %p188
      %p190 = scmp.ne.s32.totalorder %s182, %s185
      %p191 = scmp.eq.s32.totalorder %s20, 0
      %p192 = por %p190, %p191
      %p193 = scmp.ne.s32.totalorder %s182, %s185
      %p194 = scmp.eq.s32.totalorder %s25, 1
      %p195 = por %p193, %p194
      %p196 = scmp.ne.s32.totalorder %s185, %s186
      %p197 = scmp.eq.s32.totalorder %s25, 0
      %p198 = por %p196, %p197
      %p199 = scmp.ne.s32.totalorder %s185, %s186
      %p200 = scmp.eq.s32.totalorder %s26, 1
      %p201 = por %p199, %p200
      %p203 = scmp.ne.s32.totalorder %s186, %s202
      %p204 = scmp.eq.s32.totalorder %s26, 0
      %p205 = por %p203, %p204
      %p206 = scmp.le.s32.totalorder 1, %s20
      %p207 = scmp.lt.s32.totalorder %s20, 3
      %p208 = pnand %p206, %p207
      %p209 = pneg %p208
      // Predicated region
      $region9: #{tpu_custom_call.1} parent=5 // pred_check
        _
      $region10: #{tpu_custom_call.1} parent=5 // pred_check_branch
        %211 = sbr.rel (%p208) target = $region12
      $region11: #{tpu_custom_call.1} parent=5 // pred_region
        %s212 = ssub.s32 %s20, 1
        // Predicated region
        $region13: #{tpu_custom_call.1} parent=11 // pred_check
          %p213 = pneg %p67
        $region14: #{tpu_custom_call.1} parent=11 // pred_check_branch
          %215 = sbr.rel (%p213) target = $region16
        $region15: #{tpu_custom_call.1} parent=11 // pred_region
          %s217 = ssub.s32 4096, 4096
          %218 = vsyncadd [#allocation6], %s217
          %s219 = sshll.u32 [#allocation5], 4
          %s220 = int_to_ptr.vmem [resolvable:$true] %s219
          %225 = dma.hbm_to_vmem [thread:$0]  %s1, 4096, %s220, [#allocation6], 256, 256, 16
        $region16: #{tpu_custom_call.1} parent=11 // pred_fallthru
          _
        // Predicated region
        $region17: #{tpu_custom_call.1} parent=11 // pred_check
          %p226 = pneg %p88
        $region18: #{tpu_custom_call.1} parent=11 // pred_check_branch
          %228 = sbr.rel (%p226) target = $region20
        $region19: #{tpu_custom_call.1} parent=11 // pred_region
          _
        $region20: #{tpu_custom_call.1} parent=11 // pred_fallthru
          _
        // Predicated region
        $region21: #{tpu_custom_call.1} parent=11 // pred_check
          %p229 = pneg %p109
        $region22: #{tpu_custom_call.1} parent=11 // pred_check_branch
          %231 = sbr.rel (%p229) target = $region24
        $region23: #{tpu_custom_call.1} parent=11 // pred_region
          %s233 = ssub.s32 4096, 4096
          %234 = vsyncadd [#allocation6], %s233
          %s235 = sshll.u32 [#allocation7], 4
          %s236 = int_to_ptr.vmem [resolvable:$true] %s235
          %241 = dma.hbm_to_vmem [thread:$0]  %s3, 4096, %s236, [#allocation6], 128, 128, 8
        $region24: #{tpu_custom_call.1} parent=11 // pred_fallthru
          _
        // Predicated region
        $region25: #{tpu_custom_call.1} parent=11 // pred_check
          %p242 = pneg %p130
        $region26: #{tpu_custom_call.1} parent=11 // pred_check_branch
          %244 = sbr.rel (%p242) target = $region28
        $region27: #{tpu_custom_call.1} parent=11 // pred_region
          _
        $region28: #{tpu_custom_call.1} parent=11 // pred_fallthru
          _
        // Predicated region
        $region29: #{tpu_custom_call.1} parent=11 // pred_check
          %p245 = pneg %p151
        $region30: #{tpu_custom_call.1} parent=11 // pred_check_branch
          %247 = sbr.rel (%p245) target = $region32
        $region31: #{tpu_custom_call.1} parent=11 // pred_region
          _
        $region32: #{tpu_custom_call.1} parent=11 // pred_fallthru
          _
        // Predicated region
        $region33: #{tpu_custom_call.1} parent=11 // pred_check
          %p248 = pneg %p172
        $region34: #{tpu_custom_call.1} parent=11 // pred_check_branch
          %250 = sbr.rel (%p248) target = $region36
        $region35: #{tpu_custom_call.1} parent=11 // pred_region
          _
        $region36: #{tpu_custom_call.1} parent=11 // pred_fallthru
          _
      $region12: #{tpu_custom_call.1} parent=5 // pred_fallthru
        _
      %p251 = scmp.lt.s32.totalorder %s20, 2
      // Predicated region
      $region37: #{tpu_custom_call.1} parent=5 // pred_check
        %p252 = pneg %p251
      $region38: #{tpu_custom_call.1} parent=5 // pred_check_branch
        %254 = sbr.rel (%p252) target = $region40
      $region39: #{tpu_custom_call.1} parent=5 // pred_region
        // Predicated region
        $region41: #{tpu_custom_call.1} parent=39 // pred_check
          %p255 = pneg %p40
        $region42: #{tpu_custom_call.1} parent=39 // pred_check_branch
          %257 = sbr.rel (%p255) target = $region44
        $region43: #{tpu_custom_call.1} parent=39 // pred_region
          %s258 = sand.u32 %s30, 1
          %s259 = scalar_lea.sflag [#allocation3], %s258
          %s260 = sand.u32 %s30, 1
          %s261 = smul.addr %s260, 64
          %s262 = scalar_lea.vmem [#allocation2], %s261
          %s263 = smul.u32 8, %s20
          %s265 = ssub.s32 1024, 1024
          %266 = vsyncadd %s259, %s265
          %s267 = smul.addr %s263, 128
          %s268 = scalar_lea.hbm %s0, %s267
          %s269 = sshll.u32 %s262, 4
          %s270 = int_to_ptr.vmem [resolvable:$true] %s269
          %275 = dma.hbm_to_vmem [thread:$0]  %s268, 1024, %s270, %s259, 128, 128, 8
        $region44: #{tpu_custom_call.1} parent=39 // pred_fallthru
          _
      $region40: #{tpu_custom_call.1} parent=5 // pred_fallthru
        _
      %p276 = scmp.le.s32.totalorder 1, %s20
      %p277 = scmp.lt.s32.totalorder %s20, 3
      %p278 = pnand %p276, %p277
      %p279 = pneg %p278
      // Predicated region
      $region45: #{tpu_custom_call.1} parent=5 // pred_check
        _
      $region46: #{tpu_custom_call.1} parent=5 // pred_check_branch
        %281 = sbr.rel (%p278) target = $region48
      $region47: #{tpu_custom_call.1} parent=5 // pred_region
        %s282 = ssub.s32 %s20, 1
        %s283 = sand.u32 %s33, 1
        %s284 = scalar_lea.sflag [#allocation3], %s283
        %s285 = sand.u32 %s33, 1
        %s286 = smul.addr %s285, 64
        %s287 = scalar_lea.vmem [#allocation2], %s286
        // Predicated region
        $region49: #{tpu_custom_call.1} parent=47 // pred_check
          %p288 = pneg %p46
        $region50: #{tpu_custom_call.1} parent=47 // pred_check_branch
          %290 = sbr.rel (%p288) target = $region52
        $region51: #{tpu_custom_call.1} parent=47 // pred_region
          %291 = dma.done %s284, 1024
        $region52: #{tpu_custom_call.1} parent=47 // pred_fallthru
          _
        // Predicated region
        $region53: #{tpu_custom_call.1} parent=47 // pred_check
          %p292 = pneg %p67
        $region54: #{tpu_custom_call.1} parent=47 // pred_check_branch
          %294 = sbr.rel (%p292) target = $region56
        $region55: #{tpu_custom_call.1} parent=47 // pred_region
          %295 = dma.done [#allocation6], 4096
        $region56: #{tpu_custom_call.1} parent=47 // pred_fallthru
          _
        // Predicated region
        $region57: #{tpu_custom_call.1} parent=47 // pred_check
          %p296 = pneg %p109
        $region58: #{tpu_custom_call.1} parent=47 // pred_check_branch
          %298 = sbr.rel (%p296) target = $region60
        $region59: #{tpu_custom_call.1} parent=47 // pred_region
          %299 = dma.done [#allocation6], 4096
        $region60: #{tpu_custom_call.1} parent=47 // pred_fallthru
          _
        %s300 = sand.u32 %s33, 1
        %s301 = scalar_lea.sflag [#allocation3], %s300
        %s302 = sand.u32 %s33, 1
        %s303 = smul.addr %s302, 64
        %s304 = scalar_lea.vmem [#allocation2], %s303
        %p305 = pneg %p46
        %p306 = pneg %p43
        %p307 = pneg %p67
        %p308 = pneg %p64
        %p309 = pneg %p88
        %p310 = pneg %p85
        %p311 = pneg %p109
        %p312 = pneg %p106
        %p313 = pneg %p130
        %p314 = pneg %p127
        %p315 = pneg %p151
        %p316 = pneg %p148
        %p317 = pneg %p172
        %p318 = pneg %p169
        %p319 = pneg %p198
        %p320 = pneg %p195
        %s321 = sand.u32 %s185, 1
        %s322 = scalar_lea.sflag [#allocation4], %s321
        %s323 = sand.u32 %s185, 1
        %s324 = smul.addr %s323, 64
        %s325 = scalar_lea.vmem [#allocation8], %s324
        %s326 = smul.u32 8, %s25
        %s327 = smul.u32 8, %s25
        %v328 = vld [vmem:[%s287] sm:$0xff]
        %v329 = vld [vmem:[%s287 + $0x8] sm:$0xff]
        %v330 = vld [vmem:[%s287 + $0x10] sm:$0xff]
        %v331 = vld [vmem:[%s287 + $0x18] sm:$0xff]
        %v332 = vld [vmem:[%s287 + $0x20] sm:$0xff]
        %v333 = vld [vmem:[%s287 + $0x28] sm:$0xff]
        %v334 = vld [vmem:[%s287 + $0x30] sm:$0xff]
        %v335 = vld [vmem:[%s287 + $0x38] sm:$0xff]
        %v336 = vld [vmem:[#allocation5] sm:$0xff]
        %v337 = vld [vmem:[#allocation5 + $0x8] sm:$0xff]
        %v338 = vld [vmem:[#allocation5 + $0x10] sm:$0xff]
        %v339 = vld [vmem:[#allocation5 + $0x18] sm:$0xff]
        %v340 = vld [vmem:[#allocation5 + $0x20] sm:$0xff]
        %v341 = vld [vmem:[#allocation5 + $0x28] sm:$0xff]
        %v342 = vld [vmem:[#allocation5 + $0x30] sm:$0xff]
        %v343 = vld [vmem:[#allocation5 + $0x38] sm:$0xff]
        %v344 = vld [vmem:[#allocation5 + $0x40] sm:$0xff]
        %v345 = vld [vmem:[#allocation5 + $0x48] sm:$0xff]
        %v346 = vld [vmem:[#allocation5 + $0x50] sm:$0xff]
        %v347 = vld [vmem:[#allocation5 + $0x58] sm:$0xff]
        %v348 = vld [vmem:[#allocation5 + $0x60] sm:$0xff]
        %v349 = vld [vmem:[#allocation5 + $0x68] sm:$0xff]
        %v350 = vld [vmem:[#allocation5 + $0x70] sm:$0xff]
        %v351 = vld [vmem:[#allocation5 + $0x78] sm:$0xff]
        %v352 = vld [vmem:[#allocation5 + $0x80] sm:$0xff]
        %v353 = vld [vmem:[#allocation5 + $0x88] sm:$0xff]
        %v354 = vld [vmem:[#allocation5 + $0x90] sm:$0xff]
        %v355 = vld [vmem:[#allocation5 + $0x98] sm:$0xff]
        %v356 = vld [vmem:[#allocation5 + $0xa0] sm:$0xff]
        %v357 = vld [vmem:[#allocation5 + $0xa8] sm:$0xff]
        %v358 = vld [vmem:[#allocation5 + $0xb0] sm:$0xff]
        %v359 = vld [vmem:[#allocation5 + $0xb8] sm:$0xff]
        %v360 = vld [vmem:[#allocation5 + $0xc0] sm:$0xff]
        %v361 = vld [vmem:[#allocation5 + $0xc8] sm:$0xff]
        %v362 = vld [vmem:[#allocation5 + $0xd0] sm:$0xff]
        %v363 = vld [vmem:[#allocation5 + $0xd8] sm:$0xff]
        %v364 = vld [vmem:[#allocation5 + $0xe0] sm:$0xff]
        %v365 = vld [vmem:[#allocation5 + $0xe8] sm:$0xff]
        %v366 = vld [vmem:[#allocation5 + $0xf0] sm:$0xff]
        %v367 = vld [vmem:[#allocation5 + $0xf8] sm:$0xff]
        %v368 = vld [vmem:[%s2] sm:$0x3]
        %v370 = vlaneseq
        %v371 = vshrl.u32 %v370, 7
        %v372 = vsub.s32 0, %v371
        %v373 = vrot.slane %v368, %v372
        %v374 = vlaneseq
        %v375 = vshrl.u32 %v374, 7
        %v376 = vsub.s32 1, %v375
        %v377 = vrot.slane %v368, %v376
        %380 = vmatprep.subr.mxu0 %v337
        %381 = vmatpush1.msra.mxu0 %v336
        %382 = vmatprep.subr.mxu0 %v339
        %383 = vmatpush1.msra.mxu0 %v338
        %384 = vmatprep.subr.mxu0 %v341
        %385 = vmatpush1.msra.mxu0 %v340
        %386 = vmatprep.subr.mxu0 %v343
        %387 = vmatpush1.msra.mxu0 %v342
        %388 = vmatprep.subr.mxu0 %v345
        %389 = vmatpush1.msra.mxu0 %v344
        %390 = vmatprep.subr.mxu0 %v347
        %391 = vmatpush1.msra.mxu0 %v346
        %392 = vmatprep.subr.mxu0 %v349
        %393 = vmatpush1.msra.mxu0 %v348
        %394 = vmatprep.subr.mxu0 %v351
        %395 = vmatpush1.msra.mxu0 %v350
        %396 = vmatprep.subr.mxu0 %v353
        %397 = vmatpush1.msra.mxu0 %v352
        %398 = vmatprep.subr.mxu0 %v355
        %399 = vmatpush1.msra.mxu0 %v354
        %400 = vmatprep.subr.mxu0 %v357
        %401 = vmatpush1.msra.mxu0 %v356
        %402 = vmatprep.subr.mxu0 %v359
        %403 = vmatpush1.msra.mxu0 %v358
        %404 = vmatprep.subr.mxu0 %v361
        %405 = vmatpush1.msra.mxu0 %v360
        %406 = vmatprep.subr.mxu0 %v363
        %407 = vmatpush1.msra.mxu0 %v362
        %408 = vmatprep.subr.mxu0 %v365
        %409 = vmatpush1.msra.mxu0 %v364
        %410 = vmatprep.subr.mxu0 %v367
        %411 = vmatpush1.msra.mxu0 %v366
        %412 = vmatprep.subr.mxu0 0.0
        %413 = vmatpush1.msra.mxu0 0.0
        %414 = vmatprep.subr.mxu0 0.0
        %415 = vmatpush1.msra.mxu0 0.0
        %416 = vmatprep.subr.mxu0 0.0
        %417 = vmatpush1.msra.mxu0 0.0
        %418 = vmatprep.subr.mxu0 0.0
        %419 = vmatpush1.msra.mxu0 0.0
        %420 = vmatprep.subr.mxu0 0.0
        %421 = vmatpush1.msra.mxu0 0.0
        %422 = vmatprep.subr.mxu0 0.0
        %423 = vmatpush1.msra.mxu0 0.0
        %424 = vmatprep.subr.mxu0 0.0
        %425 = vmatpush1.msra.mxu0 0.0
        %426 = vmatprep.subr.mxu0 0.0
        %427 = vmatpush1.msra.mxu0 0.0
        %428 = vmatprep.subr.mxu0 0.0
        %429 = vmatpush1.msra.mxu0 0.0
        %430 = vmatprep.subr.mxu0 0.0
        %431 = vmatpush1.msra.mxu0 0.0
        %432 = vmatprep.subr.mxu0 0.0
        %433 = vmatpush1.msra.mxu0 0.0
        %434 = vmatprep.subr.mxu0 0.0
        %435 = vmatpush1.msra.mxu0 0.0
        %436 = vmatprep.subr.mxu0 0.0
        %437 = vmatpush1.msra.mxu0 0.0
        %438 = vmatprep.subr.mxu0 0.0
        %439 = vmatpush1.msra.mxu0 0.0
        %440 = vmatprep.subr.mxu0 0.0
        %441 = vmatpush1.msra.mxu0 0.0
        %442 = vmatprep.subr.mxu0 0.0
        %443 = vmatpush1.msra.mxu0 0.0
        %444 = vmatprep.mubr.f32.mxu0 0.0
        %445 = vmatmul.mubr.f32.gmra.mrb[0].mxu0 %v328
        %v446 = vpop.f32.mrb[0].mxu0
        %v447 = vadd.f32 %v373, %v446
        %v448 = vpop.f32.mrb[0].mxu0
        %v449 = vadd.f32 %v377, %v448
        %450 = vmatprep.mubr.f32.mxu0 0.0
        %451 = vmatmul.mubr.f32.gmra.mrb[0].mxu0 %v329
        %v452 = vpop.f32.mrb[0].mxu0
        %v453 = vadd.f32 %v373, %v452
        %v454 = vpop.f32.mrb[0].mxu0
        %v455 = vadd.f32 %v377, %v454
        %456 = vmatprep.mubr.f32.mxu0 0.0
        %457 = vmatmul.mubr.f32.gmra.mrb[0].mxu0 %v330
        %v458 = vpop.f32.mrb[0].mxu0
        %v459 = vadd.f32 %v373, %v458
        %v460 = vpop.f32.mrb[0].mxu0
        %v461 = vadd.f32 %v377, %v460
        %462 = vmatprep.mubr.f32.mxu0 0.0
        %463 = vmatmul.mubr.f32.gmra.mrb[0].mxu0 %v331
        %v464 = vpop.f32.mrb[0].mxu0
        %v465 = vadd.f32 %v373, %v464
        %v466 = vpop.f32.mrb[0].mxu0
        %v467 = vadd.f32 %v377, %v466
        %468 = vmatprep.mubr.f32.mxu0 0.0
        %469 = vmatmul.mubr.f32.gmra.mrb[0].mxu0 %v332
        %v470 = vpop.f32.mrb[0].mxu0
        %v471 = vadd.f32 %v373, %v470
        %v472 = vpop.f32.mrb[0].mxu0
        %v473 = vadd.f32 %v377, %v472
        %474 = vmatprep.mubr.f32.mxu0 0.0
        %475 = vmatmul.mubr.f32.gmra.mrb[0].mxu0 %v333
        %v476 = vpop.f32.mrb[0].mxu0
        %v477 = vadd.f32 %v373, %v476
        %v478 = vpop.f32.mrb[0].mxu0
        %v479 = vadd.f32 %v377, %v478
        %480 = vmatprep.mubr.f32.mxu0 0.0
        %481 = vmatmul.mubr.f32.gmra.mrb[0].mxu0 %v334
        %v482 = vpop.f32.mrb[0].mxu0
        %v483 = vadd.f32 %v373, %v482
        %v484 = vpop.f32.mrb[0].mxu0
        %v485 = vadd.f32 %v377, %v484
        %486 = vmatprep.mubr.f32.mxu0 0.0
        %487 = vmatmul.mubr.f32.gmra.mrb[0].mxu0 %v335
        %v488 = vpop.f32.mrb[0].mxu0
        %v489 = vadd.f32 %v373, %v488
        %v490 = vpop.f32.mrb[0].mxu0
        %v491 = vadd.f32 %v377, %v490
        %492 = vdwg.mxu0
        %v493 = vmax.f32 %v447, 0.0
        %v494 = vmax.f32 %v449, 0.0
        %v495 = vmax.f32 %v453, 0.0
        %v496 = vmax.f32 %v455, 0.0
        %v497 = vmax.f32 %v459, 0.0
        %v498 = vmax.f32 %v461, 0.0
        %v499 = vmax.f32 %v465, 0.0
        %v500 = vmax.f32 %v467, 0.0
        %v501 = vmax.f32 %v471, 0.0
        %v502 = vmax.f32 %v473, 0.0
        %v503 = vmax.f32 %v477, 0.0
        %v504 = vmax.f32 %v479, 0.0
        %v505 = vmax.f32 %v483, 0.0
        %v506 = vmax.f32 %v485, 0.0
        %v507 = vmax.f32 %v489, 0.0
        %v508 = vmax.f32 %v491, 0.0
        %v509 = vld [vmem:[#allocation7] sm:$0xff]
        %v510 = vld [vmem:[#allocation7 + $0x8] sm:$0xff]
        %v511 = vld [vmem:[#allocation7 + $0x10] sm:$0xff]
        %v512 = vld [vmem:[#allocation7 + $0x18] sm:$0xff]
        %v513 = vld [vmem:[#allocation7 + $0x20] sm:$0xff]
        %v514 = vld [vmem:[#allocation7 + $0x28] sm:$0xff]
        %v515 = vld [vmem:[#allocation7 + $0x30] sm:$0xff]
        %v516 = vld [vmem:[#allocation7 + $0x38] sm:$0xff]
        %v517 = vld [vmem:[#allocation7 + $0x40] sm:$0xff]
        %v518 = vld [vmem:[#allocation7 + $0x48] sm:$0xff]
        %v519 = vld [vmem:[#allocation7 + $0x50] sm:$0xff]
        %v520 = vld [vmem:[#allocation7 + $0x58] sm:$0xff]
        %v521 = vld [vmem:[#allocation7 + $0x60] sm:$0xff]
        %v522 = vld [vmem:[#allocation7 + $0x68] sm:$0xff]
        %v523 = vld [vmem:[#allocation7 + $0x70] sm:$0xff]
        %v524 = vld [vmem:[#allocation7 + $0x78] sm:$0xff]
        %v525 = vld [vmem:[#allocation7 + $0x80] sm:$0xff]
        %v526 = vld [vmem:[#allocation7 + $0x88] sm:$0xff]
        %v527 = vld [vmem:[#allocation7 + $0x90] sm:$0xff]
        %v528 = vld [vmem:[#allocation7 + $0x98] sm:$0xff]
        %v529 = vld [vmem:[#allocation7 + $0xa0] sm:$0xff]
        %v530 = vld [vmem:[#allocation7 + $0xa8] sm:$0xff]
        %v531 = vld [vmem:[#allocation7 + $0xb0] sm:$0xff]
        %v532 = vld [vmem:[#allocation7 + $0xb8] sm:$0xff]
        %v533 = vld [vmem:[#allocation7 + $0xc0] sm:$0xff]
        %v534 = vld [vmem:[#allocation7 + $0xc8] sm:$0xff]
        %v535 = vld [vmem:[#allocation7 + $0xd0] sm:$0xff]
        %v536 = vld [vmem:[#allocation7 + $0xd8] sm:$0xff]
        %v537 = vld [vmem:[#allocation7 + $0xe0] sm:$0xff]
        %v538 = vld [vmem:[#allocation7 + $0xe8] sm:$0xff]
        %v539 = vld [vmem:[#allocation7 + $0xf0] sm:$0xff]
        %v540 = vld [vmem:[#allocation7 + $0xf8] sm:$0xff]
        %v541 = vld [vmem:[%s4] sm:$0x1]
        %v543 = vlaneseq
        %v544 = vshrl.u32 %v543, 7
        %v545 = vsub.s32 0, %v544
        %v546 = vrot.slane %v541, %v545
        %548 = vmatprep.subr.mxu0 0.0
        %549 = vmatpush1.msra.mxu0 %v509
        %550 = vmatprep.subr.mxu0 0.0
        %551 = vmatpush1.msra.mxu0 %v510
        %552 = vmatprep.subr.mxu0 0.0
        %553 = vmatpush1.msra.mxu0 %v511
        %554 = vmatprep.subr.mxu0 0.0
        %555 = vmatpush1.msra.mxu0 %v512
        %556 = vmatprep.subr.mxu0 0.0
        %557 = vmatpush1.msra.mxu0 %v513
        %558 = vmatprep.subr.mxu0 0.0
        %559 = vmatpush1.msra.mxu0 %v514
        %560 = vmatprep.subr.mxu0 0.0
        %561 = vmatpush1.msra.mxu0 %v515
        %562 = vmatprep.subr.mxu0 0.0
        %563 = vmatpush1.msra.mxu0 %v516
        %564 = vmatprep.subr.mxu0 0.0
        %565 = vmatpush1.msra.mxu0 %v517
        %566 = vmatprep.subr.mxu0 0.0
        %567 = vmatpush1.msra.mxu0 %v518
        %568 = vmatprep.subr.mxu0 0.0
        %569 = vmatpush1.msra.mxu0 %v519
        %570 = vmatprep.subr.mxu0 0.0
        %571 = vmatpush1.msra.mxu0 %v520
        %572 = vmatprep.subr.mxu0 0.0
        %573 = vmatpush1.msra.mxu0 %v521
        %574 = vmatprep.subr.mxu0 0.0
        %575 = vmatpush1.msra.mxu0 %v522
        %576 = vmatprep.subr.mxu0 0.0
        %577 = vmatpush1.msra.mxu0 %v523
        %578 = vmatprep.subr.mxu0 0.0
        %579 = vmatpush1.msra.mxu0 %v524
        %580 = vmatprep.subr.mxu0 0.0
        %581 = vmatpush1.msra.mxu0 %v525
        %582 = vmatprep.subr.mxu0 0.0
        %583 = vmatpush1.msra.mxu0 %v526
        %584 = vmatprep.subr.mxu0 0.0
        %585 = vmatpush1.msra.mxu0 %v527
        %586 = vmatprep.subr.mxu0 0.0
        %587 = vmatpush1.msra.mxu0 %v528
        %588 = vmatprep.subr.mxu0 0.0
        %589 = vmatpush1.msra.mxu0 %v529
        %590 = vmatprep.subr.mxu0 0.0
        %591 = vmatpush1.msra.mxu0 %v530
        %592 = vmatprep.subr.mxu0 0.0
        %593 = vmatpush1.msra.mxu0 %v531
        %594 = vmatprep.subr.mxu0 0.0
        %595 = vmatpush1.msra.mxu0 %v532
        %596 = vmatprep.subr.mxu0 0.0
        %597 = vmatpush1.msra.mxu0 %v533
        %598 = vmatprep.subr.mxu0 0.0
        %599 = vmatpush1.msra.mxu0 %v534
        %600 = vmatprep.subr.mxu0 0.0
        %601 = vmatpush1.msra.mxu0 %v535
        %602 = vmatprep.subr.mxu0 0.0
        %603 = vmatpush1.msra.mxu0 %v536
        %604 = vmatprep.subr.mxu0 0.0
        %605 = vmatpush1.msra.mxu0 %v537
        %606 = vmatprep.subr.mxu0 0.0
        %607 = vmatpush1.msra.mxu0 %v538
        %608 = vmatprep.subr.mxu0 0.0
        %609 = vmatpush1.msra.mxu0 %v539
        %610 = vmatprep.subr.mxu0 0.0
        %611 = vmatpush1.msra.mxu0 %v540
        %612 = vmatprep.mubr.f32.mxu0 %v494
        %613 = vmatmul.mubr.f32.gmra.mrb[0].mxu0 %v493
        %v614 = vpop.f32.mrb[0].mxu0
        %v615 = vadd.f32 %v546, %v614
        %v616 = vpop.f32.mrb[0].mxu0
        %617 = vmatprep.mubr.f32.mxu0 %v496
        %618 = vmatmul.mubr.f32.gmra.mrb[0].mxu0 %v495
        %v619 = vpop.f32.mrb[0].mxu0
        %v620 = vadd.f32 %v546, %v619
        %v621 = vpop.f32.mrb[0].mxu0
        %622 = vmatprep.mubr.f32.mxu0 %v498
        %623 = vmatmul.mubr.f32.gmra.mrb[0].mxu0 %v497
        %v624 = vpop.f32.mrb[0].mxu0
        %v625 = vadd.f32 %v546, %v624
        %v626 = vpop.f32.mrb[0].mxu0
        %627 = vmatprep.mubr.f32.mxu0 %v500
        %628 = vmatmul.mubr.f32.gmra.mrb[0].mxu0 %v499
        %v629 = vpop.f32.mrb[0].mxu0
        %v630 = vadd.f32 %v546, %v629
        %v631 = vpop.f32.mrb[0].mxu0
        %632 = vmatprep.mubr.f32.mxu0 %v502
        %633 = vmatmul.mubr.f32.gmra.mrb[0].mxu0 %v501
        %v634 = vpop.f32.mrb[0].mxu0
        %v635 = vadd.f32 %v546, %v634
        %v636 = vpop.f32.mrb[0].mxu0
        %637 = vmatprep.mubr.f32.mxu0 %v504
        %638 = vmatmul.mubr.f32.gmra.mrb[0].mxu0 %v503
        %v639 = vpop.f32.mrb[0].mxu0
        %v640 = vadd.f32 %v546, %v639
        %v641 = vpop.f32.mrb[0].mxu0
        %642 = vmatprep.mubr.f32.mxu0 %v506
        %643 = vmatmul.mubr.f32.gmra.mrb[0].mxu0 %v505
        %v644 = vpop.f32.mrb[0].mxu0
        %v645 = vadd.f32 %v546, %v644
        %v646 = vpop.f32.mrb[0].mxu0
        %647 = vmatprep.mubr.f32.mxu0 %v508
        %648 = vmatmul.mubr.f32.gmra.mrb[0].mxu0 %v507
        %v649 = vpop.f32.mrb[0].mxu0
        %v650 = vadd.f32 %v546, %v649
        %v651 = vpop.f32.mrb[0].mxu0
        %652 = vdwg.mxu0
        %v653 = vadd.f32 %v328, %v615
        %v654 = vadd.f32 %v329, %v620
        %v655 = vadd.f32 %v330, %v625
        %v656 = vadd.f32 %v331, %v630
        %v657 = vadd.f32 %v332, %v635
        %v658 = vadd.f32 %v333, %v640
        %v659 = vadd.f32 %v334, %v645
        %v660 = vadd.f32 %v335, %v650
        %661 = vadd.xlane.f32.xlu0 %v653
        %v662 = vpop.xlane.xlu0 %661
        %663 = vadd.xlane.f32.xlu0 %v654
        %v664 = vpop.xlane.xlu0 %663
        %665 = vadd.xlane.f32.xlu0 %v655
        %v666 = vpop.xlane.xlu0 %665
        %667 = vadd.xlane.f32.xlu0 %v656
        %v668 = vpop.xlane.xlu0 %667
        %669 = vadd.xlane.f32.xlu0 %v657
        %v670 = vpop.xlane.xlu0 %669
        %671 = vadd.xlane.f32.xlu0 %v658
        %v672 = vpop.xlane.xlu0 %671
        %673 = vadd.xlane.f32.xlu0 %v659
        %v674 = vpop.xlane.xlu0 %673
        %675 = vadd.xlane.f32.xlu0 %v660
        %v676 = vpop.xlane.xlu0 %675
        %v677 = vrcp.pop 128.0
        %v678 = vmul.f32 %v662, %v677
        %v679 = vmul.f32 %v664, %v677
        %v680 = vmul.f32 %v666, %v677
        %v681 = vmul.f32 %v668, %v677
        %v682 = vmul.f32 %v670, %v677
        %v683 = vmul.f32 %v672, %v677
        %v684 = vmul.f32 %v674, %v677
        %v685 = vmul.f32 %v676, %v677
        %v686 = vsub.f32 %v653, %v678
        %v687 = vsub.f32 %v654, %v679
        %v688 = vsub.f32 %v655, %v680
        %v689 = vsub.f32 %v656, %v681
        %v690 = vsub.f32 %v657, %v682
        %v691 = vsub.f32 %v658, %v683
        %v692 = vsub.f32 %v659, %v684
        %v693 = vsub.f32 %v660, %v685
        %v694 = vmul.f32 %v686, %v686
        %v695 = vmul.f32 %v687, %v687
        %v696 = vmul.f32 %v688, %v688
        %v697 = vmul.f32 %v689, %v689
        %v698 = vmul.f32 %v690, %v690
        %v699 = vmul.f32 %v691, %v691
        %v700 = vmul.f32 %v692, %v692
        %v701 = vmul.f32 %v693, %v693
        %702 = vadd.xlane.f32.xlu0 %v694
        %v703 = vpop.xlane.xlu0 %702
        %704 = vadd.xlane.f32.xlu0 %v695
        %v705 = vpop.xlane.xlu0 %704
        %706 = vadd.xlane.f32.xlu0 %v696
        %v707 = vpop.xlane.xlu0 %706
        %708 = vadd.xlane.f32.xlu0 %v697
        %v709 = vpop.xlane.xlu0 %708
        %710 = vadd.xlane.f32.xlu0 %v698
        %v711 = vpop.xlane.xlu0 %710
        %712 = vadd.xlane.f32.xlu0 %v699
        %v713 = vpop.xlane.xlu0 %712
        %714 = vadd.xlane.f32.xlu0 %v700
        %v715 = vpop.xlane.xlu0 %714
        %716 = vadd.xlane.f32.xlu0 %v701
        %v717 = vpop.xlane.xlu0 %716
        %v718 = vmul.f32 %v703, %v677
        %v719 = vmul.f32 %v705, %v677
        %v720 = vmul.f32 %v707, %v677
        %v721 = vmul.f32 %v709, %v677
        %v722 = vmul.f32 %v711, %v677
        %v723 = vmul.f32 %v713, %v677
        %v724 = vmul.f32 %v715, %v677
        %v725 = vmul.f32 %v717, %v677
        %v726 = vadd.f32 %v718, 1e-05
        %v727 = vadd.f32 %v719, 1e-05
        %v728 = vadd.f32 %v720, 1e-05
        %v729 = vadd.f32 %v721, 1e-05
        %v730 = vadd.f32 %v722, 1e-05
        %v731 = vadd.f32 %v723, 1e-05
        %v732 = vadd.f32 %v724, 1e-05
        %v733 = vadd.f32 %v725, 1e-05
        %v734 = vrsqrt.pop %v726
        %v735 = vrsqrt.pop %v727
        %v736 = vrsqrt.pop %v728
        %v737 = vrsqrt.pop %v729
        %v738 = vrsqrt.pop %v730
        %v739 = vrsqrt.pop %v731
        %v740 = vrsqrt.pop %v732
        %v741 = vrsqrt.pop %v733
        %v742 = vmul.f32 %v686, %v734
        %v743 = vmul.f32 %v687, %v735
        %v744 = vmul.f32 %v688, %v736
        %v745 = vmul.f32 %v689, %v737
        %v746 = vmul.f32 %v690, %v738
        %v747 = vmul.f32 %v691, %v739
        %v748 = vmul.f32 %v692, %v740
        %v749 = vmul.f32 %v693, %v741
        %v750 = vld [vmem:[%s5] sm:$0x1]
        %v752 = vlaneseq
        %v753 = vshrl.u32 %v752, 7
        %v754 = vsub.s32 0, %v753
        %v755 = vrot.slane %v750, %v754
        %v757 = vmul.f32 %v742, %v755
        %v758 = vmul.f32 %v743, %v755
        %v759 = vmul.f32 %v744, %v755
        %v760 = vmul.f32 %v745, %v755
        %v761 = vmul.f32 %v746, %v755
        %v762 = vmul.f32 %v747, %v755
        %v763 = vmul.f32 %v748, %v755
        %v764 = vmul.f32 %v749, %v755
        %v765 = vld [vmem:[%s6] sm:$0x1]
        %v767 = vlaneseq
        %v768 = vshrl.u32 %v767, 7
        %v769 = vsub.s32 0, %v768
        %v770 = vrot.slane %v765, %v769
        %v772 = vadd.f32 %v757, %v770
        %v773 = vadd.f32 %v758, %v770
        %v774 = vadd.f32 %v759, %v770
        %v775 = vadd.f32 %v760, %v770
        %v776 = vadd.f32 %v761, %v770
        %v777 = vadd.f32 %v762, %v770
        %v778 = vadd.f32 %v763, %v770
        %v779 = vadd.f32 %v764, %v770
        %780 = vst [vmem:[%s325] sm:$0xff] %v772
        %781 = vst [vmem:[%s325 + $0x8] sm:$0xff] %v773
        %782 = vst [vmem:[%s325 + $0x10] sm:$0xff] %v774
        %783 = vst [vmem:[%s325 + $0x18] sm:$0xff] %v775
        %784 = vst [vmem:[%s325 + $0x20] sm:$0xff] %v776
        %785 = vst [vmem:[%s325 + $0x28] sm:$0xff] %v777
        %786 = vst [vmem:[%s325 + $0x30] sm:$0xff] %v778
        %787 = vst [vmem:[%s325 + $0x38] sm:$0xff] %v779
        %s788 = sand.u32 %s185, 1
        %s789 = scalar_lea.sflag [#allocation4], %s788
        %s790 = sand.u32 %s185, 1
        %s791 = smul.addr %s790, 64
        %s792 = scalar_lea.vmem [#allocation8], %s791
        // Predicated region
        $region61: #{tpu_custom_call.1} parent=47 // pred_check
          %p793 = pneg %p195
        $region62: #{tpu_custom_call.1} parent=47 // pred_check_branch
          %795 = sbr.rel (%p793) target = $region64
        $region63: #{tpu_custom_call.1} parent=47 // pred_region
          %s796 = smul.u32 8, %s25
          %s798 = ssub.s32 1024, 1024
          %799 = vsyncadd %s789, %s798
          %s800 = smul.addr %s796, 128
          %s801 = scalar_lea.hbm %s7, %s800
          %s802 = sshll.u32 %s792, 4
          %s803 = int_to_ptr.vmem [resolvable:$true] %s802
          %808 = dma.vmem_to_hbm [thread:$0]  %s803, 1024, %s801, %s789, 128, 128, 8
        $region64: #{tpu_custom_call.1} parent=47 // pred_fallthru
          _
      $region48: #{tpu_custom_call.1} parent=5 // pred_fallthru
        _
      %p809 = scmp.le.s32.totalorder 2, %s20
      // Predicated region
      $region65: #{tpu_custom_call.1} parent=5 // pred_check
        %p810 = pneg %p809
      $region66: #{tpu_custom_call.1} parent=5 // pred_check_branch
        %812 = sbr.rel (%p810) target = $region68
      $region67: #{tpu_custom_call.1} parent=5 // pred_region
        %s813 = ssub.s32 %s20, 2
        // Predicated region
        $region69: #{tpu_custom_call.1} parent=67 // pred_check
          %p814 = pneg %p201
        $region70: #{tpu_custom_call.1} parent=67 // pred_check_branch
          %816 = sbr.rel (%p814) target = $region72
        $region71: #{tpu_custom_call.1} parent=67 // pred_region
          %s817 = sand.u32 %s186, 1
          %s818 = scalar_lea.sflag [#allocation4], %s817
          %s819 = sand.u32 %s186, 1
          %s820 = smul.addr %s819, 64
          %s821 = scalar_lea.vmem [#allocation8], %s820
          %822 = dma.done %s818, 1024
        $region72: #{tpu_custom_call.1} parent=67 // pred_fallthru
          _
      $region68: #{tpu_custom_call.1} parent=5 // pred_fallthru
        _
    $region6: #{tpu_custom_call.1} parent=1 // loop_footer
      %s24 = sadd.s32 1, %s20
    $region7: #{tpu_custom_call.1} parent=1 // loop_footer_branch
      %19 = sbr.rel target = $region3
    $region8: #{tpu_custom_call.1} parent=1 // loop_exit
      _
    %823 = vsyncpa [#allocation3], 1
    %s824 = scalar_lea.sflag [#allocation3], 1
    %825 = vsyncpa %s824, 1
    %826 = vsyncpa [#allocation6], 1
    %827 = vsyncpa [#allocation4], 1
    %s828 = scalar_lea.sflag [#allocation4], 1
    %829 = vsyncpa %s828, 1

</llo_original>
